<compile_context>
chip_gen: v7x
topology: tpu7x:2x2x1
jax: 0.10.0
libtpu: 0.0.40
codegen_flags: <defaults>
</compile_context>

<pallas_src>
import functools

import jax
import jax.numpy as jnp
from jax import lax
from jax.experimental import pallas as pl
from jax.experimental.pallas import tpu as pltpu


EPS = 1e-5
LEAK = 0.2

_ARBITRARY_1D = pltpu.CompilerParams(dimension_semantics=("arbitrary",))


# ----------------------------- Pallas kernels ------------------------------

def _conv_bn_lrelu_kernel(p_ref, w_ref, g_ref, b_ref, o_ref):
    """Fused conv-as-matmul -> BatchNorm (batch stats) -> LeakyReLU(0.2).

    Conv bias is intentionally omitted: a per-channel constant added before
    training-mode BatchNorm is exactly absorbed by the mean subtraction.
    """
    y = jnp.dot(p_ref[...], w_ref[...], preferred_element_type=jnp.float32)
    mean = jnp.mean(y, axis=0, keepdims=True)                      # (1, C)
    var = jnp.mean(jnp.square(y - mean), axis=0, keepdims=True)    # biased
    scale = g_ref[...] * lax.rsqrt(var + EPS)
    shift = b_ref[...] - mean * scale
    z = y * scale + shift
    o_ref[...] = jnp.where(z >= 0, z, LEAK * z)


def _conv_bn_lrelu_final_kernel(p_ref, w_ref, g_ref, b_ref, w3_ref, b3_ref,
                                o_ref, *, n_batch, rows_per_sample):
    """Blocks 2+3 fused: conv+BN+LeakyReLU, then the final conv.

    The final 4x4/stride-2 conv has a single spatial output position here, so
    it is expressed as a masked per-sample weighted sum over the VMEM-resident
    block-2 activation.  w3_ref is (Ho*Wo, C2) with zeros in the spatial
    positions the 4x4 window does not cover.
    """
    # Block 2 (bias absorbed by BN, as above).
    y = jnp.dot(p_ref[...], w_ref[...], preferred_element_type=jnp.float32)
    mean = jnp.mean(y, axis=0, keepdims=True)
    var = jnp.mean(jnp.square(y - mean), axis=0, keepdims=True)
    scale = g_ref[...] * lax.rsqrt(var + EPS)
    shift = b_ref[...] - mean * scale
    z = y * scale + shift
    a = jnp.where(z >= 0, z, LEAK * z)                # (N*Ho*Wo, C2), in VMEM

    # Block 3: masked weighted sum per sample (static slices only).
    w3 = w3_ref[...]                                  # (Ho*Wo, C2)
    vals = []
    for n in range(n_batch):
        blk = a[n * rows_per_sample:(n + 1) * rows_per_sample, :]
        vals.append(jnp.sum(blk * w3, axis=(0, 1), keepdims=True))  # (1, 1)
    o_ref[...] = jnp.concatenate(vals, axis=0) + b3_ref[...]        # (N, 1)


# --------------------------- pallas_call wrappers ---------------------------

def conv_bn_lrelu(patches, w_mat, gamma, beta):
    M, K = patches.shape
    C = w_mat.shape[1]
    return pl.pallas_call(
        _conv_bn_lrelu_kernel,
        out_shape=jax.ShapeDtypeStruct((M, C), jnp.float32),
        grid=(1,),
        in_specs=[
            pl.BlockSpec((M, K), lambda i: (0, 0)),
            pl.BlockSpec((K, C), lambda i: (0, 0)),
            pl.BlockSpec((1, C), lambda i: (0, 0)),
            pl.BlockSpec((1, C), lambda i: (0, 0)),
        ],
        out_specs=pl.BlockSpec((M, C), lambda i: (0, 0)),
        compiler_params=_ARBITRARY_1D,
    )(patches, w_mat, gamma.reshape(1, C), beta.reshape(1, C))


def conv_bn_lrelu_final(patches, w_mat, gamma, beta, w3_masked, bias3, n_batch):
    M, K = patches.shape
    C = w_mat.shape[1]
    rows = M // n_batch
    kernel = functools.partial(_conv_bn_lrelu_final_kernel,
                               n_batch=n_batch, rows_per_sample=rows)
    return pl.pallas_call(
        kernel,
        out_shape=jax.ShapeDtypeStruct((n_batch, 1), jnp.float32),
        grid=(1,),
        in_specs=[
            pl.BlockSpec((M, K), lambda i: (0, 0)),
            pl.BlockSpec((K, C), lambda i: (0, 0)),
            pl.BlockSpec((1, C), lambda i: (0, 0)),
            pl.BlockSpec((1, C), lambda i: (0, 0)),
            pl.BlockSpec((rows, C), lambda i: (0, 0)),
            pl.BlockSpec((1, 1), lambda i: (0, 0)),
        ],
        out_specs=pl.BlockSpec((n_batch, 1), lambda i: (0, 0)),
        compiler_params=_ARBITRARY_1D,
    )(patches, w_mat, gamma.reshape(1, C), beta.reshape(1, C),
      w3_masked, bias3.reshape(1, 1))


# ------------------------------ JAX glue -----------------------------------

def im2col_nhwc(x, k, s):
    # x: (N, H, W, C) -> (N*Ho*Wo, k*k*C); columns ordered (kh, kw, C).
    N, H, W, C = x.shape
    Ho = (H - k) // s + 1
    Wo = (W - k) // s + 1
    cols = [x[:, i:i + s * Ho:s, j:j + s * Wo:s, :]
            for i in range(k) for j in range(k)]
    p = jnp.stack(cols, axis=3)                     # (N, Ho, Wo, k*k, C)
    return p.reshape(N * Ho * Wo, k * k * C), Ho, Wo


def _w_mat(w):
    # PyTorch (Cout, Cin, kh, kw) -> (kh*kw*Cin, Cout), matching im2col cols.
    Cout, Cin, kh, kw = w.shape
    return w.transpose(2, 3, 1, 0).reshape(kh * kw * Cin, Cout)


def init_params(key, im_chan=1, hidden_dim=16):
    k = 4
    shapes = [
        (hidden_dim, im_chan, k, k),
        (hidden_dim * 2, hidden_dim, k, k),
        (1, hidden_dim * 2, k, k),
    ]
    params = []
    for i, s in enumerate(shapes):
        key, wk = jax.random.split(key)
        w = 0.02 * jax.random.normal(wk, s, dtype=jnp.float32)
        b = jnp.zeros((s[0],), jnp.float32)
        if i < len(shapes) - 1:
            gamma = jnp.ones((s[0],), jnp.float32)
            beta = jnp.zeros((s[0],), jnp.float32)
        else:
            gamma, beta = None, None
        params.append((w, b, gamma, beta))
    return params


@jax.jit
def discriminator_forward(params, image):
    (w1, _b1, g1, be1), (w2, _b2, g2, be2), (w3, b3, _, _) = params
    N = image.shape[0]
    k, s = 4, 2
    x = image.transpose(0, 2, 3, 1)                 # NCHW -> NHWC, once

    # Block 1: one fused kernel (conv matmul + BN batch stats + LeakyReLU).
    p1, H1, W1 = im2col_nhwc(x, k, s)
    a1 = conv_bn_lrelu(p1, _w_mat(w1), g1, be1)     # (N*H1*W1, hidden)

    # Blocks 2 + 3: one fused kernel; block-2 activation never leaves VMEM.
    C1 = w1.shape[0]
    p2, H2, W2 = im2col_nhwc(a1.reshape(N, H1, W1, C1), k, s)
    H3 = (H2 - k) // s + 1
    W3 = (W2 - k) // s + 1
    assert H3 == 1 and W3 == 1, "fused final block assumes a 1x1 output map"
    C2 = w2.shape[0]
    w3_r = w3.transpose(2, 3, 1, 0).reshape(k, k, C2)          # (kh, kw, Cin)
    w3_masked = jnp.pad(w3_r, ((0, H2 - k), (0, W2 - k), (0, 0)))
    w3_masked = w3_masked.reshape(H2 * W2, C2)
    out = conv_bn_lrelu_final(p2, _w_mat(w2), g2, be2, w3_masked, b3, N)

    # disc_pred.view(len(disc_pred), -1)
    return out.reshape(N, -1)


def reference_forward(params, image, eps=EPS):
    # pure-JAX reference (lax.conv) for correctness checking
    x = image
    n_blocks = len(params)
    for i, (w, b, g, be) in enumerate(params):
        y = lax.conv_general_dilated(
            x, w, window_strides=(2, 2), padding="VALID",
            dimension_numbers=("NCHW", "OIHW", "NCHW"))
        y = y + b[None, :, None, None]
        if i < n_blocks - 1:
            mean = jnp.mean(y, axis=(0, 2, 3), keepdims=True)
            var = jnp.mean((y - mean) ** 2, axis=(0, 2, 3), keepdims=True)
            y = (y - mean) / jnp.sqrt(var + eps)
            y = y * g[None, :, None, None] + be[None, :, None, None]
            y = jnp.where(y >= 0, y, LEAK * y)
        x = y
    return x.reshape(x.shape[0], -1)


if __name__ == "__main__":
    key = jax.random.PRNGKey(0)
    pkey, xkey = jax.random.split(key)
    params = init_params(pkey, im_chan=1, hidden_dim=16)

    # MNIST-like input: batch=2, 1 channel, 28x28 (spatial: 28 -> 13 -> 5 -> 1)
    image = jax.random.normal(xkey, (2, 1, 28, 28), dtype=jnp.float32)

    out = discriminator_forward(params, image)
    out = jax.block_until_ready(out)

    ref = reference_forward(params, image)
    assert out.shape == (2, 1), out.shape
    assert jnp.allclose(out, ref, rtol=1e-3, atol=1e-3), (out, ref)
    print("KERNEL_OK")
</pallas_src>

<mosaic_0001>
module attributes {stable_mosaic.version = 11 : i64} {
  func.func @_conv_bn_lrelu_kernel(%arg0: i32, %arg1: memref<338x16xf32, #tpu.memory_space<vmem>>, %arg2: memref<16x16xf32, #tpu.memory_space<vmem>>, %arg3: memref<1x16xf32, #tpu.memory_space<vmem>>, %arg4: memref<1x16xf32, #tpu.memory_space<vmem>>, %arg5: memref<338x16xf32, #tpu.memory_space<vmem>>) attributes {dimension_semantics = [#tpu.dimension_semantics<arbitrary>], iteration_bounds = array<i64: 1>, scalar_prefetch = 0 : i64, scratch_operands = 0 : i64, tpu.core_type = #tpu.core_type<tc>, window_params = [{pipeline_mode = #tpu.pipeline_mode<synchronous>, transform_indices = @transform_0, window_bounds = array<i64: 338, 16>}, {pipeline_mode = #tpu.pipeline_mode<synchronous>, transform_indices = @transform_1, window_bounds = array<i64: 16, 16>}, {pipeline_mode = #tpu.pipeline_mode<synchronous>, transform_indices = @transform_2, window_bounds = array<i64: 1, 16>}, {pipeline_mode = #tpu.pipeline_mode<synchronous>, transform_indices = @transform_3, window_bounds = array<i64: 1, 16>}, {pipeline_mode = #tpu.pipeline_mode<synchronous>, transform_indices = @transform_4, window_bounds = array<i64: 338, 16>}]} {
    %c0 = arith.constant 0 : index
    %c0_0 = arith.constant 0 : index
    %0 = vector.load %arg1[%c0, %c0_0] : memref<338x16xf32, #tpu.memory_space<vmem>>, vector<338x16xf32>
    %c0_1 = arith.constant 0 : index
    %c0_2 = arith.constant 0 : index
    %1 = vector.load %arg2[%c0_1, %c0_2] : memref<16x16xf32, #tpu.memory_space<vmem>>, vector<16x16xf32>
    %cst = arith.constant dense<0.000000e+00> : vector<338x16xf32>
    %2 = tpu.matmul %0, %1, %cst {dimension_numbers = #tpu.dot_dimension_numbers<[1], [0], [0], [1], [0, 0, 1, 1], [], []>} : vector<338x16xf32>, vector<16x16xf32>, vector<338x16xf32> -> vector<338x16xf32>
    %cst_3 = arith.constant dense<0.000000e+00> : vector<16xf32>
    %3 = vector.multi_reduction <add>, %2, %cst_3 [0] : vector<338x16xf32> to vector<16xf32>
    %4 = vector.shape_cast %3 : vector<16xf32> to vector<1x16xf32>
    %cst_4 = arith.constant 3.380000e+02 : f32
    %5 = vector.broadcast %cst_4 : f32 to vector<1x16xf32>
    %6 = arith.divf %4, %5 : vector<1x16xf32>
    %7 = vector.broadcast %6 : vector<1x16xf32> to vector<338x16xf32>
    %8 = arith.subf %2, %7 : vector<338x16xf32>
    %9 = arith.mulf %8, %8 : vector<338x16xf32>
    %cst_5 = arith.constant dense<0.000000e+00> : vector<16xf32>
    %10 = vector.multi_reduction <add>, %9, %cst_5 [0] : vector<338x16xf32> to vector<16xf32>
    %11 = vector.shape_cast %10 : vector<16xf32> to vector<1x16xf32>
    %cst_6 = arith.constant 3.380000e+02 : f32
    %12 = vector.broadcast %cst_6 : f32 to vector<1x16xf32>
    %13 = arith.divf %11, %12 : vector<1x16xf32>
    %c0_7 = arith.constant 0 : index
    %c0_8 = arith.constant 0 : index
    %14 = vector.load %arg3[%c0_7, %c0_8] : memref<1x16xf32, #tpu.memory_space<vmem>>, vector<1x16xf32>
    %cst_9 = arith.constant 9.99999974E-6 : f32
    %15 = vector.broadcast %cst_9 : f32 to vector<1x16xf32>
    %16 = arith.addf %13, %15 : vector<1x16xf32>
    %17 = math.rsqrt %16 : vector<1x16xf32>
    %18 = arith.mulf %14, %17 : vector<1x16xf32>
    %c0_10 = arith.constant 0 : index
    %c0_11 = arith.constant 0 : index
    %19 = vector.load %arg4[%c0_10, %c0_11] : memref<1x16xf32, #tpu.memory_space<vmem>>, vector<1x16xf32>
    %20 = arith.mulf %6, %18 : vector<1x16xf32>
    %21 = arith.subf %19, %20 : vector<1x16xf32>
    %22 = vector.broadcast %18 : vector<1x16xf32> to vector<338x16xf32>
    %23 = arith.mulf %2, %22 : vector<338x16xf32>
    %24 = vector.broadcast %21 : vector<1x16xf32> to vector<338x16xf32>
    %25 = arith.addf %23, %24 : vector<338x16xf32>
    %cst_12 = arith.constant 0.000000e+00 : f32
    %26 = vector.broadcast %cst_12 : f32 to vector<338x16xf32>
    %27 = arith.cmpf oge, %25, %26 : vector<338x16xf32>
    %cst_13 = arith.constant 2.000000e-01 : f32
    %28 = vector.broadcast %cst_13 : f32 to vector<338x16xf32>
    %29 = arith.mulf %28, %25 : vector<338x16xf32>
    %30 = arith.select %27, %25, %29 : vector<338x16xi1>, vector<338x16xf32>
    %c0_14 = arith.constant 0 : index
    %c0_15 = arith.constant 0 : index
    %31 = vector.load %arg5[%c0_14, %c0_15] : memref<338x16xf32, #tpu.memory_space<vmem>>, vector<338x16xf32>
    tpu.vector_store %arg5[%c0_14, %c0_15], %30 {strides = array<i32>} : memref<338x16xf32, #tpu.memory_space<vmem>>, vector<338x16xf32>,
    return
  }
  func.func @transform_0(%arg0: i32) -> (i32, i32) {
    %c0_i32 = arith.constant 0 : i32
    %c0_i32_0 = arith.constant 0 : i32
    %c0_i32_1 = arith.constant 0 : i32
    return %c0_i32, %c0_i32_0 : i32, i32
  }
  func.func @transform_1(%arg0: i32) -> (i32, i32) {
    %c0_i32 = arith.constant 0 : i32
    %c0_i32_0 = arith.constant 0 : i32
    %c0_i32_1 = arith.constant 0 : i32
    return %c0_i32, %c0_i32_0 : i32, i32
  }
  func.func @transform_2(%arg0: i32) -> (i32, i32) {
    %c0_i32 = arith.constant 0 : i32
    %c0_i32_0 = arith.constant 0 : i32
    %c0_i32_1 = arith.constant 0 : i32
    return %c0_i32, %c0_i32_0 : i32, i32
  }
  func.func @transform_3(%arg0: i32) -> (i32, i32) {
    %c0_i32 = arith.constant 0 : i32
    %c0_i32_0 = arith.constant 0 : i32
    %c0_i32_1 = arith.constant 0 : i32
    return %c0_i32, %c0_i32_0 : i32, i32
  }
  func.func @transform_4(%arg0: i32) -> (i32, i32) {
    %c0_i32 = arith.constant 0 : i32
    %c0_i32_0 = arith.constant 0 : i32
    %c0_i32_1 = arith.constant 0 : i32
    return %c0_i32, %c0_i32_0 : i32, i32
  }
}

module attributes {stable_mosaic.version = 11 : i64} {
  func.func @_conv_bn_lrelu_final_kernel(%arg0: i32, %arg1: memref<50x256xf32, #tpu.memory_space<vmem>>, %arg2: memref<256x32xf32, #tpu.memory_space<vmem>>, %arg3: memref<1x32xf32, #tpu.memory_space<vmem>>, %arg4: memref<1x32xf32, #tpu.memory_space<vmem>>, %arg5: memref<25x32xf32, #tpu.memory_space<vmem>>, %arg6: memref<1x1xf32, #tpu.memory_space<vmem>>, %arg7: memref<2x1xf32, #tpu.memory_space<vmem>>) attributes {dimension_semantics = [#tpu.dimension_semantics<arbitrary>], iteration_bounds = array<i64: 1>, scalar_prefetch = 0 : i64, scratch_operands = 0 : i64, tpu.core_type = #tpu.core_type<tc>, window_params = [{pipeline_mode = #tpu.pipeline_mode<synchronous>, transform_indices = @transform_0, window_bounds = array<i64: 50, 256>}, {pipeline_mode = #tpu.pipeline_mode<synchronous>, transform_indices = @transform_1, window_bounds = array<i64: 256, 32>}, {pipeline_mode = #tpu.pipeline_mode<synchronous>, transform_indices = @transform_2, window_bounds = array<i64: 1, 32>}, {pipeline_mode = #tpu.pipeline_mode<synchronous>, transform_indices = @transform_3, window_bounds = array<i64: 1, 32>}, {pipeline_mode = #tpu.pipeline_mode<synchronous>, transform_indices = @transform_4, window_bounds = array<i64: 25, 32>}, {pipeline_mode = #tpu.pipeline_mode<synchronous>, transform_indices = @transform_5, window_bounds = array<i64: 1, 1>}, {pipeline_mode = #tpu.pipeline_mode<synchronous>, transform_indices = @transform_6, window_bounds = array<i64: 2, 1>}]} {
    %c0 = arith.constant 0 : index
    %c0_0 = arith.constant 0 : index
    %0 = vector.load %arg1[%c0, %c0_0] : memref<50x256xf32, #tpu.memory_space<vmem>>, vector<50x256xf32>
    %c0_1 = arith.constant 0 : index
    %c0_2 = arith.constant 0 : index
    %1 = vector.load %arg2[%c0_1, %c0_2] : memref<256x32xf32, #tpu.memory_space<vmem>>, vector<256x32xf32>
    %cst = arith.constant dense<0.000000e+00> : vector<50x32xf32>
    %2 = tpu.matmul %0, %1, %cst {dimension_numbers = #tpu.dot_dimension_numbers<[1], [0], [0], [1], [0, 0, 1, 1], [], []>} : vector<50x256xf32>, vector<256x32xf32>, vector<50x32xf32> -> vector<50x32xf32>
    %cst_3 = arith.constant dense<0.000000e+00> : vector<32xf32>
    %3 = vector.multi_reduction <add>, %2, %cst_3 [0] : vector<50x32xf32> to vector<32xf32>
    %4 = vector.shape_cast %3 : vector<32xf32> to vector<1x32xf32>
    %cst_4 = arith.constant 5.000000e+01 : f32
    %5 = vector.broadcast %cst_4 : f32 to vector<1x32xf32>
    %6 = arith.divf %4, %5 : vector<1x32xf32>
    %7 = vector.broadcast %6 : vector<1x32xf32> to vector<50x32xf32>
    %8 = arith.subf %2, %7 : vector<50x32xf32>
    %9 = arith.mulf %8, %8 : vector<50x32xf32>
    %cst_5 = arith.constant dense<0.000000e+00> : vector<32xf32>
    %10 = vector.multi_reduction <add>, %9, %cst_5 [0] : vector<50x32xf32> to vector<32xf32>
    %11 = vector.shape_cast %10 : vector<32xf32> to vector<1x32xf32>
    %cst_6 = arith.constant 5.000000e+01 : f32
    %12 = vector.broadcast %cst_6 : f32 to vector<1x32xf32>
    %13 = arith.divf %11, %12 : vector<1x32xf32>
    %c0_7 = arith.constant 0 : index
    %c0_8 = arith.constant 0 : index
    %14 = vector.load %arg3[%c0_7, %c0_8] : memref<1x32xf32, #tpu.memory_space<vmem>>, vector<1x32xf32>
    %cst_9 = arith.constant 9.99999974E-6 : f32
    %15 = vector.broadcast %cst_9 : f32 to vector<1x32xf32>
    %16 = arith.addf %13, %15 : vector<1x32xf32>
    %17 = math.rsqrt %16 : vector<1x32xf32>
    %18 = arith.mulf %14, %17 : vector<1x32xf32>
    %c0_10 = arith.constant 0 : index
    %c0_11 = arith.constant 0 : index
    %19 = vector.load %arg4[%c0_10, %c0_11] : memref<1x32xf32, #tpu.memory_space<vmem>>, vector<1x32xf32>
    %20 = arith.mulf %6, %18 : vector<1x32xf32>
    %21 = arith.subf %19, %20 : vector<1x32xf32>
    %22 = vector.broadcast %18 : vector<1x32xf32> to vector<50x32xf32>
    %23 = arith.mulf %2, %22 : vector<50x32xf32>
    %24 = vector.broadcast %21 : vector<1x32xf32> to vector<50x32xf32>
    %25 = arith.addf %23, %24 : vector<50x32xf32>
    %cst_12 = arith.constant 0.000000e+00 : f32
    %26 = vector.broadcast %cst_12 : f32 to vector<50x32xf32>
    %27 = arith.cmpf oge, %25, %26 : vector<50x32xf32>
    %cst_13 = arith.constant 2.000000e-01 : f32
    %28 = vector.broadcast %cst_13 : f32 to vector<50x32xf32>
    %29 = arith.mulf %28, %25 : vector<50x32xf32>
    %30 = arith.select %27, %25, %29 : vector<50x32xi1>, vector<50x32xf32>
    %c0_14 = arith.constant 0 : index
    %c0_15 = arith.constant 0 : index
    %31 = vector.load %arg5[%c0_14, %c0_15] : memref<25x32xf32, #tpu.memory_space<vmem>>, vector<25x32xf32>
    %32 = vector.extract_strided_slice %30 {offsets = [0, 0], sizes = [25, 32], strides = [1, 1]} : vector<50x32xf32> to vector<25x32xf32>
    %33 = arith.mulf %32, %31 : vector<25x32xf32>
    %34 = vector.shape_cast %33 : vector<25x32xf32> to vector<1x25x32xf32>
    %cst_16 = arith.constant dense<0.000000e+00> : vector<1xf32>
    %35 = vector.multi_reduction <add>, %34, %cst_16 [1, 2] : vector<1x25x32xf32> to vector<1xf32>
    %36 = vector.shape_cast %35 : vector<1xf32> to vector<1x1x1xf32>
    %37 = vector.extract %36[0, 0, 0] : f32 from vector<1x1x1xf32>
    %38 = vector.broadcast %37 : f32 to vector<1x1xf32>
    %39 = vector.extract_strided_slice %30 {offsets = [25, 0], sizes = [25, 32], strides = [1, 1]} : vector<50x32xf32> to vector<25x32xf32>
    %40 = arith.mulf %39, %31 : vector<25x32xf32>
    %41 = vector.shape_cast %40 : vector<25x32xf32> to vector<1x25x32xf32>
    %cst_17 = arith.constant dense<0.000000e+00> : vector<1xf32>
    %42 = vector.multi_reduction <add>, %41, %cst_17 [1, 2] : vector<1x25x32xf32> to vector<1xf32>
    %43 = vector.shape_cast %42 : vector<1xf32> to vector<1x1x1xf32>
    %44 = vector.extract %43[0, 0, 0] : f32 from vector<1x1x1xf32>
    %45 = vector.broadcast %44 : f32 to vector<1x1xf32>
    %46 = tpu.concatenate %38, %45 in 0 : vector<1x1xf32>, vector<1x1xf32> -> vector<2x1xf32>
    %c0_18 = arith.constant 0 : index
    %c0_19 = arith.constant 0 : index
    %47 = vector.load %arg6[%c0_18, %c0_19] : memref<1x1xf32, #tpu.memory_space<vmem>>, vector<1x1xf32>
    %48 = vector.broadcast %47 : vector<1x1xf32> to vector<2x1xf32>
    %49 = arith.addf %46, %48 : vector<2x1xf32>
    %c0_20 = arith.constant 0 : index
    %c0_21 = arith.constant 0 : index
    %50 = vector.load %arg7[%c0_20, %c0_21] : memref<2x1xf32, #tpu.memory_space<vmem>>, vector<2x1xf32>
    tpu.vector_store %arg7[%c0_20, %c0_21], %49 {strides = array<i32>} : memref<2x1xf32, #tpu.memory_space<vmem>>, vector<2x1xf32>,
    return
  }
  func.func @transform_0(%arg0: i32) -> (i32, i32) {
    %c0_i32 = arith.constant 0 : i32
    %c0_i32_0 = arith.constant 0 : i32
    %c0_i32_1 = arith.constant 0 : i32
    return %c0_i32, %c0_i32_0 : i32, i32
  }
  func.func @transform_1(%arg0: i32) -> (i32, i32) {
    %c0_i32 = arith.constant 0 : i32
    %c0_i32_0 = arith.constant 0 : i32
    %c0_i32_1 = arith.constant 0 : i32
    return %c0_i32, %c0_i32_0 : i32, i32
  }
  func.func @transform_2(%arg0: i32) -> (i32, i32) {
    %c0_i32 = arith.constant 0 : i32
    %c0_i32_0 = arith.constant 0 : i32
    %c0_i32_1 = arith.constant 0 : i32
    return %c0_i32, %c0_i32_0 : i32, i32
  }
  func.func @transform_3(%arg0: i32) -> (i32, i32) {
    %c0_i32 = arith.constant 0 : i32
    %c0_i32_0 = arith.constant 0 : i32
    %c0_i32_1 = arith.constant 0 : i32
    return %c0_i32, %c0_i32_0 : i32, i32
  }
  func.func @transform_4(%arg0: i32) -> (i32, i32) {
    %c0_i32 = arith.constant 0 : i32
    %c0_i32_0 = arith.constant 0 : i32
    %c0_i32_1 = arith.constant 0 : i32
    return %c0_i32, %c0_i32_0 : i32, i32
  }
  func.func @transform_5(%arg0: i32) -> (i32, i32) {
    %c0_i32 = arith.constant 0 : i32
    %c0_i32_0 = arith.constant 0 : i32
    %c0_i32_1 = arith.constant 0 : i32
    return %c0_i32, %c0_i32_0 : i32, i32
  }
  func.func @transform_6(%arg0: i32) -> (i32, i32) {
    %c0_i32 = arith.constant 0 : i32
    %c0_i32_0 = arith.constant 0 : i32
    %c0_i32_1 = arith.constant 0 : i32
    return %c0_i32, %c0_i32_0 : i32, i32
  }
}

</mosaic_0001>

<llo_original>
// kernel: discriminator_forward.2
$region0: #{discriminator_forward.2}
  #allocation0 [shape = 'u32[]', space=smem, size = 0x4, offset = 0x4, fixed_abs, tag = 'smem constant byte address 0x4 - core index']
  #allocation1 [shape = 'u32[144,128]{1,0:T(1,128)}', space=vmem, size = 0x12000, scoped, tag = 'internal scratch']
  %s0 = inlined_call_operand.vmem [shape: f32[338,16], index: 0, kind: input, shape index: {}]
  %s1 = inlined_call_operand.vmem [shape: f32[16,16], index: 1, kind: input, shape index: {}]
  %s2 = inlined_call_operand.vmem [shape: f32[1,16], index: 2, kind: input, shape index: {}]
  %s3 = inlined_call_operand.vmem [shape: f32[1,16], index: 3, kind: input, shape index: {}]
  %s4 = inlined_call_operand.vmem [shape: f32[338,16], index: 4, kind: output, shape index: {}]
  %s5 = sld [smem:[#allocation0]]
  $region26: #{discriminator_forward.2} parent=0
    _
  %s7 = ssub.s32 1, %s5
  %s8 = scalar_select 0, %s7, %s5
  // Predicated region
  $region2: #{discriminator_forward.2} parent=0 // pred_check
    _
  $region3: #{discriminator_forward.2} parent=0 // pred_check_branch
    %10 = sbr.rel (0) target = $region5
  $region4: #{discriminator_forward.2} parent=0 // pred_region
    _
  $region5: #{discriminator_forward.2} parent=0 // pred_fallthru
    _
  // Predicated region
  $region6: #{discriminator_forward.2} parent=0 // pred_check
    _
  $region7: #{discriminator_forward.2} parent=0 // pred_check_branch
    %12 = sbr.rel (0) target = $region9
  $region8: #{discriminator_forward.2} parent=0 // pred_region
    _
  $region9: #{discriminator_forward.2} parent=0 // pred_fallthru
    _
  // Predicated region
  $region10: #{discriminator_forward.2} parent=0 // pred_check
    _
  $region11: #{discriminator_forward.2} parent=0 // pred_check_branch
    %14 = sbr.rel (0) target = $region13
  $region12: #{discriminator_forward.2} parent=0 // pred_region
    _
  $region13: #{discriminator_forward.2} parent=0 // pred_fallthru
    _
  // Predicated region
  $region14: #{discriminator_forward.2} parent=0 // pred_check
    _
  $region15: #{discriminator_forward.2} parent=0 // pred_check_branch
    %16 = sbr.rel (0) target = $region17
  $region16: #{discriminator_forward.2} parent=0 // pred_region
    _
  $region17: #{discriminator_forward.2} parent=0 // pred_fallthru
    _
  %v17 = vld [vmem:[%s0] sm:$0xff]
  %v18 = vld [vmem:[%s0 + $0x8] sm:$0xff]
  %v19 = vld [vmem:[%s0 + $0x10] sm:$0xff]
  %v20 = vld [vmem:[%s0 + $0x18] sm:$0xff]
  %v21 = vld [vmem:[%s0 + $0x20] sm:$0xff]
  %v22 = vld [vmem:[%s0 + $0x28] sm:$0xff]
  %v23 = vld [vmem:[%s0 + $0x30] sm:$0xff]
  %v24 = vld [vmem:[%s0 + $0x38] sm:$0xff]
  %v25 = vld [vmem:[%s0 + $0x40] sm:$0xff]
  %v26 = vld [vmem:[%s0 + $0x48] sm:$0xff]
  %v27 = vld [vmem:[%s0 + $0x50] sm:$0xff]
  %v28 = vld [vmem:[%s0 + $0x58] sm:$0xff]
  %v29 = vld [vmem:[%s0 + $0x60] sm:$0xff]
  %v30 = vld [vmem:[%s0 + $0x68] sm:$0xff]
  %v31 = vld [vmem:[%s0 + $0x70] sm:$0xff]
  %v32 = vld [vmem:[%s0 + $0x78] sm:$0xff]
  %v33 = vld [vmem:[%s0 + $0x80] sm:$0xff]
  %v34 = vld [vmem:[%s0 + $0x88] sm:$0xff]
  %v35 = vld [vmem:[%s0 + $0x90] sm:$0xff]
  %v36 = vld [vmem:[%s0 + $0x98] sm:$0xff]
  %v37 = vld [vmem:[%s0 + $0xa0] sm:$0xff]
  %v38 = vld [vmem:[%s0 + $0xa8] sm:$0xff]
  %v39 = vld [vmem:[%s0 + $0xb0] sm:$0xff]
  %v40 = vld [vmem:[%s0 + $0xb8] sm:$0xff]
  %v41 = vld [vmem:[%s0 + $0xc0] sm:$0xff]
  %v42 = vld [vmem:[%s0 + $0xc8] sm:$0xff]
  %v43 = vld [vmem:[%s0 + $0xd0] sm:$0xff]
  %v44 = vld [vmem:[%s0 + $0xd8] sm:$0xff]
  %v45 = vld [vmem:[%s0 + $0xe0] sm:$0xff]
  %v46 = vld [vmem:[%s0 + $0xe8] sm:$0xff]
  %v47 = vld [vmem:[%s0 + $0xf0] sm:$0xff]
  %v48 = vld [vmem:[%s0 + $0xf8] sm:$0xff]
  %v49 = vld [vmem:[%s0 + $0x100] sm:$0xff]
  %v50 = vld [vmem:[%s0 + $0x108] sm:$0xff]
  %v51 = vld [vmem:[%s0 + $0x110] sm:$0xff]
  %v52 = vld [vmem:[%s0 + $0x118] sm:$0xff]
  %v53 = vld [vmem:[%s0 + $0x120] sm:$0xff]
  %v54 = vld [vmem:[%s0 + $0x128] sm:$0xff]
  %v55 = vld [vmem:[%s0 + $0x130] sm:$0xff]
  %v56 = vld [vmem:[%s0 + $0x138] sm:$0xff]
  %v57 = vld [vmem:[%s0 + $0x140] sm:$0xff]
  %v58 = vld [vmem:[%s0 + $0x148] sm:$0xff]
  %v59 = vld [vmem:[%s0 + $0x150] sm:$0x3]
  %v60 = vld [vmem:[%s1] sm:$0xff]
  %v61 = vld [vmem:[%s1 + $0x8] sm:$0xff]
  %vm62 = vcmask 130048
  %v64 = vsel %vm62, %v17, 0
  %v67 = vsel %vm62, %v18, 0
  %v70 = vsel %vm62, %v19, 0
  %v73 = vsel %vm62, %v20, 0
  %v76 = vsel %vm62, %v21, 0
  %v79 = vsel %vm62, %v22, 0
  %v82 = vsel %vm62, %v23, 0
  %v85 = vsel %vm62, %v24, 0
  %v88 = vsel %vm62, %v25, 0
  %v91 = vsel %vm62, %v26, 0
  %v94 = vsel %vm62, %v27, 0
  %v97 = vsel %vm62, %v28, 0
  %v100 = vsel %vm62, %v29, 0
  %v103 = vsel %vm62, %v30, 0
  %v106 = vsel %vm62, %v31, 0
  %v109 = vsel %vm62, %v32, 0
  %v112 = vsel %vm62, %v33, 0
  %v115 = vsel %vm62, %v34, 0
  %v118 = vsel %vm62, %v35, 0
  %v121 = vsel %vm62, %v36, 0
  %v124 = vsel %vm62, %v37, 0
  %v127 = vsel %vm62, %v38, 0
  %v130 = vsel %vm62, %v39, 0
  %v133 = vsel %vm62, %v40, 0
  %v136 = vsel %vm62, %v41, 0
  %v139 = vsel %vm62, %v42, 0
  %v142 = vsel %vm62, %v43, 0
  %v145 = vsel %vm62, %v44, 0
  %v148 = vsel %vm62, %v45, 0
  %v151 = vsel %vm62, %v46, 0
  %v154 = vsel %vm62, %v47, 0
  %v157 = vsel %vm62, %v48, 0
  %v160 = vsel %vm62, %v49, 0
  %v163 = vsel %vm62, %v50, 0
  %v166 = vsel %vm62, %v51, 0
  %v169 = vsel %vm62, %v52, 0
  %v172 = vsel %vm62, %v53, 0
  %v175 = vsel %vm62, %v54, 0
  %v178 = vsel %vm62, %v55, 0
  %v181 = vsel %vm62, %v56, 0
  %v184 = vsel %vm62, %v57, 0
  %v187 = vsel %vm62, %v58, 0
  %v190 = vsel %vm62, %v59, 0
  %192 = vmatprep.subr.mxu0 0.0
  %193 = vmatpush1.msra.mxu0 %v60
  %194 = vmatprep.subr.mxu0 0.0
  %195 = vmatpush1.msra.mxu0 %v61
  %196 = vmatprep.subr.mxu0 0.0
  %197 = vmatpush1.msra.mxu0 0.0
  %198 = vmatprep.subr.mxu0 0.0
  %199 = vmatpush1.msra.mxu0 0.0
  %200 = vmatprep.subr.mxu0 0.0
  %201 = vmatpush1.msra.mxu0 0.0
  %202 = vmatprep.subr.mxu0 0.0
  %203 = vmatpush1.msra.mxu0 0.0
  %204 = vmatprep.subr.mxu0 0.0
  %205 = vmatpush1.msra.mxu0 0.0
  %206 = vmatprep.subr.mxu0 0.0
  %207 = vmatpush1.msra.mxu0 0.0
  %208 = vmatprep.subr.mxu0 0.0
  %209 = vmatpush1.msra.mxu0 0.0
  %210 = vmatprep.subr.mxu0 0.0
  %211 = vmatpush1.msra.mxu0 0.0
  %212 = vmatprep.subr.mxu0 0.0
  %213 = vmatpush1.msra.mxu0 0.0
  %214 = vmatprep.subr.mxu0 0.0
  %215 = vmatpush1.msra.mxu0 0.0
  %216 = vmatprep.subr.mxu0 0.0
  %217 = vmatpush1.msra.mxu0 0.0
  %218 = vmatprep.subr.mxu0 0.0
  %219 = vmatpush1.msra.mxu0 0.0
  %220 = vmatprep.subr.mxu0 0.0
  %221 = vmatpush1.msra.mxu0 0.0
  %222 = vmatprep.subr.mxu0 0.0
  %223 = vmatpush1.msra.mxu0 0.0
  %224 = vmatprep.subr.mxu0 0.0
  %225 = vmatpush1.msra.mxu0 0.0
  %226 = vmatprep.subr.mxu0 0.0
  %227 = vmatpush1.msra.mxu0 0.0
  %228 = vmatprep.subr.mxu0 0.0
  %229 = vmatpush1.msra.mxu0 0.0
  %230 = vmatprep.subr.mxu0 0.0
  %231 = vmatpush1.msra.mxu0 0.0
  %232 = vmatprep.subr.mxu0 0.0
  %233 = vmatpush1.msra.mxu0 0.0
  %234 = vmatprep.subr.mxu0 0.0
  %235 = vmatpush1.msra.mxu0 0.0
  %236 = vmatprep.subr.mxu0 0.0
  %237 = vmatpush1.msra.mxu0 0.0
  %238 = vmatprep.subr.mxu0 0.0
  %239 = vmatpush1.msra.mxu0 0.0
  %240 = vmatprep.subr.mxu0 0.0
  %241 = vmatpush1.msra.mxu0 0.0
  %242 = vmatprep.subr.mxu0 0.0
  %243 = vmatpush1.msra.mxu0 0.0
  %244 = vmatprep.subr.mxu0 0.0
  %245 = vmatpush1.msra.mxu0 0.0
  %246 = vmatprep.subr.mxu0 0.0
  %247 = vmatpush1.msra.mxu0 0.0
  %248 = vmatprep.subr.mxu0 0.0
  %249 = vmatpush1.msra.mxu0 0.0
  %250 = vmatprep.subr.mxu0 0.0
  %251 = vmatpush1.msra.mxu0 0.0
  %252 = vmatprep.subr.mxu0 0.0
  %253 = vmatpush1.msra.mxu0 0.0
  %254 = vmatprep.subr.mxu0 0.0
  %255 = vmatpush1.msra.mxu0 0.0
  %256 = vmatprep.mubr.f32.mxu0 0.0
  %257 = vmatmul.mubr.f32.gmra.mrb[0].mxu0 %v64
  %v258 = vpop.f32.mrb[0].mxu0
  %v259 = vadd.f32 0.0, %v258
  %v260 = vpop.f32.mrb[0].mxu0
  %261 = vmatprep.mubr.f32.mxu0 0.0
  %262 = vmatmul.mubr.f32.gmra.mrb[0].mxu0 %v67
  %v263 = vpop.f32.mrb[0].mxu0
  %v264 = vadd.f32 0.0, %v263
  %v265 = vpop.f32.mrb[0].mxu0
  %266 = vmatprep.mubr.f32.mxu0 0.0
  %267 = vmatmul.mubr.f32.gmra.mrb[0].mxu0 %v70
  %v268 = vpop.f32.mrb[0].mxu0
  %v269 = vadd.f32 0.0, %v268
  %v270 = vpop.f32.mrb[0].mxu0
  %271 = vmatprep.mubr.f32.mxu0 0.0
  %272 = vmatmul.mubr.f32.gmra.mrb[0].mxu0 %v73
  %v273 = vpop.f32.mrb[0].mxu0
  %v274 = vadd.f32 0.0, %v273
  %v275 = vpop.f32.mrb[0].mxu0
  %276 = vmatprep.mubr.f32.mxu0 0.0
  %277 = vmatmul.mubr.f32.gmra.mrb[0].mxu0 %v76
  %v278 = vpop.f32.mrb[0].mxu0
  %v279 = vadd.f32 0.0, %v278
  %v280 = vpop.f32.mrb[0].mxu0
  %281 = vmatprep.mubr.f32.mxu0 0.0
  %282 = vmatmul.mubr.f32.gmra.mrb[0].mxu0 %v79
  %v283 = vpop.f32.mrb[0].mxu0
  %v284 = vadd.f32 0.0, %v283
  %v285 = vpop.f32.mrb[0].mxu0
  %286 = vmatprep.mubr.f32.mxu0 0.0
  %287 = vmatmul.mubr.f32.gmra.mrb[0].mxu0 %v82
  %v288 = vpop.f32.mrb[0].mxu0
  %v289 = vadd.f32 0.0, %v288
  %v290 = vpop.f32.mrb[0].mxu0
  %291 = vmatprep.mubr.f32.mxu0 0.0
  %292 = vmatmul.mubr.f32.gmra.mrb[0].mxu0 %v85
  %v293 = vpop.f32.mrb[0].mxu0
  %v294 = vadd.f32 0.0, %v293
  %v295 = vpop.f32.mrb[0].mxu0
  %296 = vmatprep.mubr.f32.mxu0 0.0
  %297 = vmatmul.mubr.f32.gmra.mrb[0].mxu0 %v88
  %v298 = vpop.f32.mrb[0].mxu0
  %v299 = vadd.f32 0.0, %v298
  %v300 = vpop.f32.mrb[0].mxu0
  %301 = vmatprep.mubr.f32.mxu0 0.0
  %302 = vmatmul.mubr.f32.gmra.mrb[0].mxu0 %v91
  %v303 = vpop.f32.mrb[0].mxu0
  %v304 = vadd.f32 0.0, %v303
  %v305 = vpop.f32.mrb[0].mxu0
  %306 = vmatprep.mubr.f32.mxu0 0.0
  %307 = vmatmul.mubr.f32.gmra.mrb[0].mxu0 %v94
  %v308 = vpop.f32.mrb[0].mxu0
  %v309 = vadd.f32 0.0, %v308
  %v310 = vpop.f32.mrb[0].mxu0
  %311 = vmatprep.mubr.f32.mxu0 0.0
  %312 = vmatmul.mubr.f32.gmra.mrb[0].mxu0 %v97
  %v313 = vpop.f32.mrb[0].mxu0
  %v314 = vadd.f32 0.0, %v313
  %v315 = vpop.f32.mrb[0].mxu0
  %316 = vmatprep.mubr.f32.mxu0 0.0
  %317 = vmatmul.mubr.f32.gmra.mrb[0].mxu0 %v100
  %v318 = vpop.f32.mrb[0].mxu0
  %v319 = vadd.f32 0.0, %v318
  %v320 = vpop.f32.mrb[0].mxu0
  %321 = vmatprep.mubr.f32.mxu0 0.0
  %322 = vmatmul.mubr.f32.gmra.mrb[0].mxu0 %v103
  %v323 = vpop.f32.mrb[0].mxu0
  %v324 = vadd.f32 0.0, %v323
  %v325 = vpop.f32.mrb[0].mxu0
  %326 = vmatprep.mubr.f32.mxu0 0.0
  %327 = vmatmul.mubr.f32.gmra.mrb[0].mxu0 %v106
  %v328 = vpop.f32.mrb[0].mxu0
  %v329 = vadd.f32 0.0, %v328
  %v330 = vpop.f32.mrb[0].mxu0
  %331 = vmatprep.mubr.f32.mxu0 0.0
  %332 = vmatmul.mubr.f32.gmra.mrb[0].mxu0 %v109
  %v333 = vpop.f32.mrb[0].mxu0
  %v334 = vadd.f32 0.0, %v333
  %v335 = vpop.f32.mrb[0].mxu0
  %336 = vmatprep.mubr.f32.mxu0 0.0
  %337 = vmatmul.mubr.f32.gmra.mrb[0].mxu0 %v112
  %v338 = vpop.f32.mrb[0].mxu0
  %v339 = vadd.f32 0.0, %v338
  %v340 = vpop.f32.mrb[0].mxu0
  %341 = vmatprep.mubr.f32.mxu0 0.0
  %342 = vmatmul.mubr.f32.gmra.mrb[0].mxu0 %v115
  %v343 = vpop.f32.mrb[0].mxu0
  %v344 = vadd.f32 0.0, %v343
  %v345 = vpop.f32.mrb[0].mxu0
  %346 = vmatprep.mubr.f32.mxu0 0.0
  %347 = vmatmul.mubr.f32.gmra.mrb[0].mxu0 %v118
  %v348 = vpop.f32.mrb[0].mxu0
  %v349 = vadd.f32 0.0, %v348
  %v350 = vpop.f32.mrb[0].mxu0
  %351 = vmatprep.mubr.f32.mxu0 0.0
  %352 = vmatmul.mubr.f32.gmra.mrb[0].mxu0 %v121
  %v353 = vpop.f32.mrb[0].mxu0
  %v354 = vadd.f32 0.0, %v353
  %v355 = vpop.f32.mrb[0].mxu0
  %356 = vmatprep.mubr.f32.mxu0 0.0
  %357 = vmatmul.mubr.f32.gmra.mrb[0].mxu0 %v124
  %v358 = vpop.f32.mrb[0].mxu0
  %v359 = vadd.f32 0.0, %v358
  %v360 = vpop.f32.mrb[0].mxu0
  %361 = vmatprep.mubr.f32.mxu0 0.0
  %362 = vmatmul.mubr.f32.gmra.mrb[0].mxu0 %v127
  %v363 = vpop.f32.mrb[0].mxu0
  %v364 = vadd.f32 0.0, %v363
  %v365 = vpop.f32.mrb[0].mxu0
  %366 = vmatprep.mubr.f32.mxu0 0.0
  %367 = vmatmul.mubr.f32.gmra.mrb[0].mxu0 %v130
  %v368 = vpop.f32.mrb[0].mxu0
  %v369 = vadd.f32 0.0, %v368
  %v370 = vpop.f32.mrb[0].mxu0
  %371 = vmatprep.mubr.f32.mxu0 0.0
  %372 = vmatmul.mubr.f32.gmra.mrb[0].mxu0 %v133
  %v373 = vpop.f32.mrb[0].mxu0
  %v374 = vadd.f32 0.0, %v373
  %v375 = vpop.f32.mrb[0].mxu0
  %376 = vmatprep.mubr.f32.mxu0 0.0
  %377 = vmatmul.mubr.f32.gmra.mrb[0].mxu0 %v136
  %v378 = vpop.f32.mrb[0].mxu0
  %v379 = vadd.f32 0.0, %v378
  %v380 = vpop.f32.mrb[0].mxu0
  %381 = vmatprep.mubr.f32.mxu0 0.0
  %382 = vmatmul.mubr.f32.gmra.mrb[0].mxu0 %v139
  %v383 = vpop.f32.mrb[0].mxu0
  %v384 = vadd.f32 0.0, %v383
  %v385 = vpop.f32.mrb[0].mxu0
  %386 = vmatprep.mubr.f32.mxu0 0.0
  %387 = vmatmul.mubr.f32.gmra.mrb[0].mxu0 %v142
  %v388 = vpop.f32.mrb[0].mxu0
  %v389 = vadd.f32 0.0, %v388
  %v390 = vpop.f32.mrb[0].mxu0
  %391 = vmatprep.mubr.f32.mxu0 0.0
  %392 = vmatmul.mubr.f32.gmra.mrb[0].mxu0 %v145
  %v393 = vpop.f32.mrb[0].mxu0
  %v394 = vadd.f32 0.0, %v393
  %v395 = vpop.f32.mrb[0].mxu0
  %396 = vmatprep.mubr.f32.mxu0 0.0
  %397 = vmatmul.mubr.f32.gmra.mrb[0].mxu0 %v148
  %v398 = vpop.f32.mrb[0].mxu0
  %v399 = vadd.f32 0.0, %v398
  %v400 = vpop.f32.mrb[0].mxu0
  %401 = vmatprep.mubr.f32.mxu0 0.0
  %402 = vmatmul.mubr.f32.gmra.mrb[0].mxu0 %v151
  %v403 = vpop.f32.mrb[0].mxu0
  %v404 = vadd.f32 0.0, %v403
  %v405 = vpop.f32.mrb[0].mxu0
  %406 = vmatprep.mubr.f32.mxu0 0.0
  %407 = vmatmul.mubr.f32.gmra.mrb[0].mxu0 %v154
  %v408 = vpop.f32.mrb[0].mxu0
  %v409 = vadd.f32 0.0, %v408
  %v410 = vpop.f32.mrb[0].mxu0
  %411 = vmatprep.mubr.f32.mxu0 0.0
  %412 = vmatmul.mubr.f32.gmra.mrb[0].mxu0 %v157
  %v413 = vpop.f32.mrb[0].mxu0
  %v414 = vadd.f32 0.0, %v413
  %v415 = vpop.f32.mrb[0].mxu0
  %416 = vmatprep.mubr.f32.mxu0 0.0
  %417 = vmatmul.mubr.f32.gmra.mrb[0].mxu0 %v160
  %v418 = vpop.f32.mrb[0].mxu0
  %v419 = vadd.f32 0.0, %v418
  %v420 = vpop.f32.mrb[0].mxu0
  %421 = vmatprep.mubr.f32.mxu0 0.0
  %422 = vmatmul.mubr.f32.gmra.mrb[0].mxu0 %v163
  %v423 = vpop.f32.mrb[0].mxu0
  %v424 = vadd.f32 0.0, %v423
  %v425 = vpop.f32.mrb[0].mxu0
  %426 = vmatprep.mubr.f32.mxu0 0.0
  %427 = vmatmul.mubr.f32.gmra.mrb[0].mxu0 %v166
  %v428 = vpop.f32.mrb[0].mxu0
  %v429 = vadd.f32 0.0, %v428
  %v430 = vpop.f32.mrb[0].mxu0
  %431 = vmatprep.mubr.f32.mxu0 0.0
  %432 = vmatmul.mubr.f32.gmra.mrb[0].mxu0 %v169
  %v433 = vpop.f32.mrb[0].mxu0
  %v434 = vadd.f32 0.0, %v433
  %v435 = vpop.f32.mrb[0].mxu0
  %436 = vmatprep.mubr.f32.mxu0 0.0
  %437 = vmatmul.mubr.f32.gmra.mrb[0].mxu0 %v172
  %v438 = vpop.f32.mrb[0].mxu0
  %v439 = vadd.f32 0.0, %v438
  %v440 = vpop.f32.mrb[0].mxu0
  %441 = vmatprep.mubr.f32.mxu0 0.0
  %442 = vmatmul.mubr.f32.gmra.mrb[0].mxu0 %v175
  %v443 = vpop.f32.mrb[0].mxu0
  %v444 = vadd.f32 0.0, %v443
  %v445 = vpop.f32.mrb[0].mxu0
  %446 = vmatprep.mubr.f32.mxu0 0.0
  %447 = vmatmul.mubr.f32.gmra.mrb[0].mxu0 %v178
  %v448 = vpop.f32.mrb[0].mxu0
  %v449 = vadd.f32 0.0, %v448
  %v450 = vpop.f32.mrb[0].mxu0
  %451 = vmatprep.mubr.f32.mxu0 0.0
  %452 = vmatmul.mubr.f32.gmra.mrb[0].mxu0 %v181
  %v453 = vpop.f32.mrb[0].mxu0
  %v454 = vadd.f32 0.0, %v453
  %v455 = vpop.f32.mrb[0].mxu0
  %456 = vmatprep.mubr.f32.mxu0 0.0
  %457 = vmatmul.mubr.f32.gmra.mrb[0].mxu0 %v184
  %v458 = vpop.f32.mrb[0].mxu0
  %v459 = vadd.f32 0.0, %v458
  %v460 = vpop.f32.mrb[0].mxu0
  %461 = vmatprep.mubr.f32.mxu0 0.0
  %462 = vmatmul.mubr.f32.gmra.mrb[0].mxu0 %v187
  %v463 = vpop.f32.mrb[0].mxu0
  %v464 = vadd.f32 0.0, %v463
  %v465 = vpop.f32.mrb[0].mxu0
  %466 = vmatprep.mubr.f32.mxu0 0.0
  %467 = vmatmul.mubr.f32.gmra.mrb[0].mxu0 %v190
  %v468 = vpop.f32.mrb[0].mxu0
  %v469 = vadd.f32 0.0, %v468
  %v470 = vpop.f32.mrb[0].mxu0
  %471 = vdwg.mxu0
  %v472 = vsel %vm62, %v259, 0.0
  %v473 = vsel %vm62, %v264, 0.0
  %v474 = vadd.f32 %v472, %v473
  %v475 = vsel %vm62, %v269, 0.0
  %v476 = vadd.f32 %v474, %v475
  %v477 = vsel %vm62, %v274, 0.0
  %v478 = vadd.f32 %v476, %v477
  %v479 = vsel %vm62, %v279, 0.0
  %v480 = vadd.f32 %v478, %v479
  %v481 = vsel %vm62, %v284, 0.0
  %v482 = vadd.f32 %v480, %v481
  %v483 = vsel %vm62, %v289, 0.0
  %v484 = vadd.f32 %v482, %v483
  %v485 = vsel %vm62, %v294, 0.0
  %v486 = vadd.f32 %v484, %v485
  %v487 = vsel %vm62, %v299, 0.0
  %v488 = vadd.f32 %v486, %v487
  %v489 = vsel %vm62, %v304, 0.0
  %v490 = vadd.f32 %v488, %v489
  %v491 = vsel %vm62, %v309, 0.0
  %v492 = vadd.f32 %v490, %v491
  %v493 = vsel %vm62, %v314, 0.0
  %v494 = vadd.f32 %v492, %v493
  %v495 = vsel %vm62, %v319, 0.0
  %v496 = vadd.f32 %v494, %v495
  %v497 = vsel %vm62, %v324, 0.0
  %v498 = vadd.f32 %v496, %v497
  %v499 = vsel %vm62, %v329, 0.0
  %v500 = vadd.f32 %v498, %v499
  %v501 = vsel %vm62, %v334, 0.0
  %v502 = vadd.f32 %v500, %v501
  %v503 = vsel %vm62, %v339, 0.0
  %v504 = vadd.f32 %v502, %v503
  %v505 = vsel %vm62, %v344, 0.0
  %v506 = vadd.f32 %v504, %v505
  %v507 = vsel %vm62, %v349, 0.0
  %v508 = vadd.f32 %v506, %v507
  %v509 = vsel %vm62, %v354, 0.0
  %v510 = vadd.f32 %v508, %v509
  %v511 = vsel %vm62, %v359, 0.0
  %v512 = vadd.f32 %v510, %v511
  %v513 = vsel %vm62, %v364, 0.0
  %v514 = vadd.f32 %v512, %v513
  %v515 = vsel %vm62, %v369, 0.0
  %v516 = vadd.f32 %v514, %v515
  %v517 = vsel %vm62, %v374, 0.0
  %v518 = vadd.f32 %v516, %v517
  %v519 = vsel %vm62, %v379, 0.0
  %v520 = vadd.f32 %v518, %v519
  %v521 = vsel %vm62, %v384, 0.0
  %v522 = vadd.f32 %v520, %v521
  %v523 = vsel %vm62, %v389, 0.0
  %v524 = vadd.f32 %v522, %v523
  %v525 = vsel %vm62, %v394, 0.0
  %v526 = vadd.f32 %v524, %v525
  %v527 = vsel %vm62, %v399, 0.0
  %v528 = vadd.f32 %v526, %v527
  %v529 = vsel %vm62, %v404, 0.0
  %v530 = vadd.f32 %v528, %v529
  %v531 = vsel %vm62, %v409, 0.0
  %v532 = vadd.f32 %v530, %v531
  %v533 = vsel %vm62, %v414, 0.0
  %v534 = vadd.f32 %v532, %v533
  %v535 = vsel %vm62, %v419, 0.0
  %v536 = vadd.f32 %v534, %v535
  %v537 = vsel %vm62, %v424, 0.0
  %v538 = vadd.f32 %v536, %v537
  %v539 = vsel %vm62, %v429, 0.0
  %v540 = vadd.f32 %v538, %v539
  %v541 = vsel %vm62, %v434, 0.0
  %v542 = vadd.f32 %v540, %v541
  %v543 = vsel %vm62, %v439, 0.0
  %v544 = vadd.f32 %v542, %v543
  %v545 = vsel %vm62, %v444, 0.0
  %v546 = vadd.f32 %v544, %v545
  %v547 = vsel %vm62, %v449, 0.0
  %v548 = vadd.f32 %v546, %v547
  %v549 = vsel %vm62, %v454, 0.0
  %v550 = vadd.f32 %v548, %v549
  %v551 = vsel %vm62, %v459, 0.0
  %v552 = vadd.f32 %v550, %v551
  %v553 = vsel %vm62, %v464, 0.0
  %v554 = vadd.f32 %v552, %v553
  %vm555 = vcmask 123904
  %v556 = vsel %vm555, %v469, 0.0
  %v557 = vadd.f32 %v554, %v556
  %v558 = vrot.slane %v557, 4
  %v559 = vadd.f32 %v557, %v558
  %v560 = vrot.slane %v559, 2
  %v561 = vadd.f32 %v559, %v560
  %v562 = vrot.slane %v561, 1
  %v563 = vadd.f32 %v561, %v562
  %v564 = vrcp.pop 338.0
  %v565 = vmul.f32 %v563, %v564
  %v566 = vsub.f32 %v259, %v565
  %v567 = vsub.f32 %v264, %v565
  %v568 = vsub.f32 %v269, %v565
  %v569 = vsub.f32 %v274, %v565
  %v570 = vsub.f32 %v279, %v565
  %v571 = vsub.f32 %v284, %v565
  %v572 = vsub.f32 %v289, %v565
  %v573 = vsub.f32 %v294, %v565
  %v574 = vsub.f32 %v299, %v565
  %v575 = vsub.f32 %v304, %v565
  %v576 = vsub.f32 %v309, %v565
  %v577 = vsub.f32 %v314, %v565
  %v578 = vsub.f32 %v319, %v565
  %v579 = vsub.f32 %v324, %v565
  %v580 = vsub.f32 %v329, %v565
  %v581 = vsub.f32 %v334, %v565
  %v582 = vsub.f32 %v339, %v565
  %v583 = vsub.f32 %v344, %v565
  %v584 = vsub.f32 %v349, %v565
  %v585 = vsub.f32 %v354, %v565
  %v586 = vsub.f32 %v359, %v565
  %v587 = vsub.f32 %v364, %v565
  %v588 = vsub.f32 %v369, %v565
  %v589 = vsub.f32 %v374, %v565
  %v590 = vsub.f32 %v379, %v565
  %v591 = vsub.f32 %v384, %v565
  %v592 = vsub.f32 %v389, %v565
  %v593 = vsub.f32 %v394, %v565
  %v594 = vsub.f32 %v399, %v565
  %v595 = vsub.f32 %v404, %v565
  %v596 = vsub.f32 %v409, %v565
  %v597 = vsub.f32 %v414, %v565
  %v598 = vsub.f32 %v419, %v565
  %v599 = vsub.f32 %v424, %v565
  %v600 = vsub.f32 %v429, %v565
  %v601 = vsub.f32 %v434, %v565
  %v602 = vsub.f32 %v439, %v565
  %v603 = vsub.f32 %v444, %v565
  %v604 = vsub.f32 %v449, %v565
  %v605 = vsub.f32 %v454, %v565
  %v606 = vsub.f32 %v459, %v565
  %v607 = vsub.f32 %v464, %v565
  %v608 = vsub.f32 %v469, %v565
  %v609 = vmul.f32 %v566, %v566
  %v610 = vmul.f32 %v567, %v567
  %v611 = vmul.f32 %v568, %v568
  %v612 = vmul.f32 %v569, %v569
  %v613 = vmul.f32 %v570, %v570
  %v614 = vmul.f32 %v571, %v571
  %v615 = vmul.f32 %v572, %v572
  %v616 = vmul.f32 %v573, %v573
  %v617 = vmul.f32 %v574, %v574
  %v618 = vmul.f32 %v575, %v575
  %v619 = vmul.f32 %v576, %v576
  %v620 = vmul.f32 %v577, %v577
  %v621 = vmul.f32 %v578, %v578
  %v622 = vmul.f32 %v579, %v579
  %v623 = vmul.f32 %v580, %v580
  %v624 = vmul.f32 %v581, %v581
  %v625 = vmul.f32 %v582, %v582
  %v626 = vmul.f32 %v583, %v583
  %v627 = vmul.f32 %v584, %v584
  %v628 = vmul.f32 %v585, %v585
  %v629 = vmul.f32 %v586, %v586
  %v630 = vmul.f32 %v587, %v587
  %v631 = vmul.f32 %v588, %v588
  %v632 = vmul.f32 %v589, %v589
  %v633 = vmul.f32 %v590, %v590
  %v634 = vmul.f32 %v591, %v591
  %v635 = vmul.f32 %v592, %v592
  %v636 = vmul.f32 %v593, %v593
  %v637 = vmul.f32 %v594, %v594
  %v638 = vmul.f32 %v595, %v595
  %v639 = vmul.f32 %v596, %v596
  %v640 = vmul.f32 %v597, %v597
  %v641 = vmul.f32 %v598, %v598
  %v642 = vmul.f32 %v599, %v599
  %v643 = vmul.f32 %v600, %v600
  %v644 = vmul.f32 %v601, %v601
  %v645 = vmul.f32 %v602, %v602
  %v646 = vmul.f32 %v603, %v603
  %v647 = vmul.f32 %v604, %v604
  %v648 = vmul.f32 %v605, %v605
  %v649 = vmul.f32 %v606, %v606
  %v650 = vmul.f32 %v607, %v607
  %v651 = vmul.f32 %v608, %v608
  %v652 = vsel %vm62, %v609, 0.0
  %v653 = vsel %vm62, %v610, 0.0
  %v654 = vadd.f32 %v652, %v653
  %v655 = vsel %vm62, %v611, 0.0
  %v656 = vadd.f32 %v654, %v655
  %v657 = vsel %vm62, %v612, 0.0
  %v658 = vadd.f32 %v656, %v657
  %v659 = vsel %vm62, %v613, 0.0
  %v660 = vadd.f32 %v658, %v659
  %v661 = vsel %vm62, %v614, 0.0
  %v662 = vadd.f32 %v660, %v661
  %v663 = vsel %vm62, %v615, 0.0
  %v664 = vadd.f32 %v662, %v663
  %v665 = vsel %vm62, %v616, 0.0
  %v666 = vadd.f32 %v664, %v665
  %v667 = vsel %vm62, %v617, 0.0
  %v668 = vadd.f32 %v666, %v667
  %v669 = vsel %vm62, %v618, 0.0
  %v670 = vadd.f32 %v668, %v669
  %v671 = vsel %vm62, %v619, 0.0
  %v672 = vadd.f32 %v670, %v671
  %v673 = vsel %vm62, %v620, 0.0
  %v674 = vadd.f32 %v672, %v673
  %v675 = vsel %vm62, %v621, 0.0
  %v676 = vadd.f32 %v674, %v675
  %v677 = vsel %vm62, %v622, 0.0
  %v678 = vadd.f32 %v676, %v677
  %v679 = vsel %vm62, %v623, 0.0
  %v680 = vadd.f32 %v678, %v679
  %v681 = vsel %vm62, %v624, 0.0
  %v682 = vadd.f32 %v680, %v681
  %v683 = vsel %vm62, %v625, 0.0
  %v684 = vadd.f32 %v682, %v683
  %v685 = vsel %vm62, %v626, 0.0
  %v686 = vadd.f32 %v684, %v685
  %v687 = vsel %vm62, %v627, 0.0
  %v688 = vadd.f32 %v686, %v687
  %v689 = vsel %vm62, %v628, 0.0
  %v690 = vadd.f32 %v688, %v689
  %v691 = vsel %vm62, %v629, 0.0
  %v692 = vadd.f32 %v690, %v691
  %v693 = vsel %vm62, %v630, 0.0
  %v694 = vadd.f32 %v692, %v693
  %v695 = vsel %vm62, %v631, 0.0
  %v696 = vadd.f32 %v694, %v695
  %v697 = vsel %vm62, %v632, 0.0
  %v698 = vadd.f32 %v696, %v697
  %v699 = vsel %vm62, %v633, 0.0
  %v700 = vadd.f32 %v698, %v699
  %v701 = vsel %vm62, %v634, 0.0
  %v702 = vadd.f32 %v700, %v701
  %v703 = vsel %vm62, %v635, 0.0
  %v704 = vadd.f32 %v702, %v703
  %v705 = vsel %vm62, %v636, 0.0
  %v706 = vadd.f32 %v704, %v705
  %v707 = vsel %vm62, %v637, 0.0
  %v708 = vadd.f32 %v706, %v707
  %v709 = vsel %vm62, %v638, 0.0
  %v710 = vadd.f32 %v708, %v709
  %v711 = vsel %vm62, %v639, 0.0
  %v712 = vadd.f32 %v710, %v711
  %v713 = vsel %vm62, %v640, 0.0
  %v714 = vadd.f32 %v712, %v713
  %v715 = vsel %vm62, %v641, 0.0
  %v716 = vadd.f32 %v714, %v715
  %v717 = vsel %vm62, %v642, 0.0
  %v718 = vadd.f32 %v716, %v717
  %v719 = vsel %vm62, %v643, 0.0
  %v720 = vadd.f32 %v718, %v719
  %v721 = vsel %vm62, %v644, 0.0
  %v722 = vadd.f32 %v720, %v721
  %v723 = vsel %vm62, %v645, 0.0
  %v724 = vadd.f32 %v722, %v723
  %v725 = vsel %vm62, %v646, 0.0
  %v726 = vadd.f32 %v724, %v725
  %v727 = vsel %vm62, %v647, 0.0
  %v728 = vadd.f32 %v726, %v727
  %v729 = vsel %vm62, %v648, 0.0
  %v730 = vadd.f32 %v728, %v729
  %v731 = vsel %vm62, %v649, 0.0
  %v732 = vadd.f32 %v730, %v731
  %v733 = vsel %vm62, %v650, 0.0
  %v734 = vadd.f32 %v732, %v733
  %v735 = vsel %vm555, %v651, 0.0
  %v736 = vadd.f32 %v734, %v735
  %v737 = vrot.slane %v736, 4
  %v738 = vadd.f32 %v736, %v737
  %v739 = vrot.slane %v738, 2
  %v740 = vadd.f32 %v738, %v739
  %v741 = vrot.slane %v740, 1
  %v742 = vadd.f32 %v740, %v741
  %v743 = vmul.f32 %v742, %v564
  %v744 = vld [vmem:[%s2] sm:$0x1]
  %v745 = vadd.f32 %v743, 1e-05
  %v746 = vrsqrt.pop %v745
  %v747 = vmul.f32 %v744, %v746
  %v748 = vld [vmem:[%s3] sm:$0x1]
  %v749 = vmul.f32 %v565, %v747
  %v750 = vsub.f32 %v748, %v749
  %v752 = vlaneseq
  %v753 = vshrl.u32 %v752, 7
  %v754 = vsub.s32 0, %v753
  %v755 = vrot.slane %v747, %v754
  %v757 = vmul.f32 %v259, %v755
  %v758 = vmul.f32 %v264, %v755
  %v759 = vmul.f32 %v269, %v755
  %v760 = vmul.f32 %v274, %v755
  %v761 = vmul.f32 %v279, %v755
  %v762 = vmul.f32 %v284, %v755
  %v763 = vmul.f32 %v289, %v755
  %v764 = vmul.f32 %v294, %v755
  %v765 = vmul.f32 %v299, %v755
  %v766 = vmul.f32 %v304, %v755
  %v767 = vmul.f32 %v309, %v755
  %v768 = vmul.f32 %v314, %v755
  %v769 = vmul.f32 %v319, %v755
  %v770 = vmul.f32 %v324, %v755
  %v771 = vmul.f32 %v329, %v755
  %v772 = vmul.f32 %v334, %v755
  %v773 = vmul.f32 %v339, %v755
  %v774 = vmul.f32 %v344, %v755
  %v775 = vmul.f32 %v349, %v755
  %v776 = vmul.f32 %v354, %v755
  %v777 = vmul.f32 %v359, %v755
  %v778 = vmul.f32 %v364, %v755
  %v779 = vmul.f32 %v369, %v755
  %v780 = vmul.f32 %v374, %v755
  %v781 = vmul.f32 %v379, %v755
  %v782 = vmul.f32 %v384, %v755
  %v783 = vmul.f32 %v389, %v755
  %v784 = vmul.f32 %v394, %v755
  %v785 = vmul.f32 %v399, %v755
  %v786 = vmul.f32 %v404, %v755
  %v787 = vmul.f32 %v409, %v755
  %v788 = vmul.f32 %v414, %v755
  %v789 = vmul.f32 %v419, %v755
  %v790 = vmul.f32 %v424, %v755
  %v791 = vmul.f32 %v429, %v755
  %v792 = vmul.f32 %v434, %v755
  %v793 = vmul.f32 %v439, %v755
  %v794 = vmul.f32 %v444, %v755
  %v795 = vmul.f32 %v449, %v755
  %v796 = vmul.f32 %v454, %v755
  %v797 = vmul.f32 %v459, %v755
  %v798 = vmul.f32 %v464, %v755
  %v799 = vmul.f32 %v469, %v755
  %v801 = vlaneseq
  %v802 = vshrl.u32 %v801, 7
  %v803 = vsub.s32 0, %v802
  %v804 = vrot.slane %v750, %v803
  %v806 = vadd.f32 %v757, %v804
  %v807 = vadd.f32 %v758, %v804
  %v808 = vadd.f32 %v759, %v804
  %v809 = vadd.f32 %v760, %v804
  %v810 = vadd.f32 %v761, %v804
  %v811 = vadd.f32 %v762, %v804
  %v812 = vadd.f32 %v763, %v804
  %v813 = vadd.f32 %v764, %v804
  %v814 = vadd.f32 %v765, %v804
  %v815 = vadd.f32 %v766, %v804
  %v816 = vadd.f32 %v767, %v804
  %v817 = vadd.f32 %v768, %v804
  %v818 = vadd.f32 %v769, %v804
  %v819 = vadd.f32 %v770, %v804
  %v820 = vadd.f32 %v771, %v804
  %v821 = vadd.f32 %v772, %v804
  %v822 = vadd.f32 %v773, %v804
  %v823 = vadd.f32 %v774, %v804
  %v824 = vadd.f32 %v775, %v804
  %v825 = vadd.f32 %v776, %v804
  %v826 = vadd.f32 %v777, %v804
  %v827 = vadd.f32 %v778, %v804
  %v828 = vadd.f32 %v779, %v804
  %v829 = vadd.f32 %v780, %v804
  %v830 = vadd.f32 %v781, %v804
  %v831 = vadd.f32 %v782, %v804
  %v832 = vadd.f32 %v783, %v804
  %v833 = vadd.f32 %v784, %v804
  %v834 = vadd.f32 %v785, %v804
  %v835 = vadd.f32 %v786, %v804
  %v836 = vadd.f32 %v787, %v804
  %v837 = vadd.f32 %v788, %v804
  %v838 = vadd.f32 %v789, %v804
  %v839 = vadd.f32 %v790, %v804
  %v840 = vadd.f32 %v791, %v804
  %v841 = vadd.f32 %v792, %v804
  %v842 = vadd.f32 %v793, %v804
  %v843 = vadd.f32 %v794, %v804
  %v844 = vadd.f32 %v795, %v804
  %v845 = vadd.f32 %v796, %v804
  %v846 = vadd.f32 %v797, %v804
  %v847 = vadd.f32 %v798, %v804
  %v848 = vadd.f32 %v799, %v804
  %vm849 = vcmp.ge.f32.partialorder %v806, 0.0
  %vm850 = vcmp.ge.f32.partialorder %v807, 0.0
  %vm851 = vcmp.ge.f32.partialorder %v808, 0.0
  %vm852 = vcmp.ge.f32.partialorder %v809, 0.0
  %vm853 = vcmp.ge.f32.partialorder %v810, 0.0
  %vm854 = vcmp.ge.f32.partialorder %v811, 0.0
  %vm855 = vcmp.ge.f32.partialorder %v812, 0.0
  %vm856 = vcmp.ge.f32.partialorder %v813, 0.0
  %vm857 = vcmp.ge.f32.partialorder %v814, 0.0
  %vm858 = vcmp.ge.f32.partialorder %v815, 0.0
  %vm859 = vcmp.ge.f32.partialorder %v816, 0.0
  %vm860 = vcmp.ge.f32.partialorder %v817, 0.0
  %vm861 = vcmp.ge.f32.partialorder %v818, 0.0
  %vm862 = vcmp.ge.f32.partialorder %v819, 0.0
  %vm863 = vcmp.ge.f32.partialorder %v820, 0.0
  %vm864 = vcmp.ge.f32.partialorder %v821, 0.0
  %vm865 = vcmp.ge.f32.partialorder %v822, 0.0
  %vm866 = vcmp.ge.f32.partialorder %v823, 0.0
  %vm867 = vcmp.ge.f32.partialorder %v824, 0.0
  %vm868 = vcmp.ge.f32.partialorder %v825, 0.0
  %vm869 = vcmp.ge.f32.partialorder %v826, 0.0
  %vm870 = vcmp.ge.f32.partialorder %v827, 0.0
  %vm871 = vcmp.ge.f32.partialorder %v828, 0.0
  %vm872 = vcmp.ge.f32.partialorder %v829, 0.0
  %vm873 = vcmp.ge.f32.partialorder %v830, 0.0
  %vm874 = vcmp.ge.f32.partialorder %v831, 0.0
  %vm875 = vcmp.ge.f32.partialorder %v832, 0.0
  %vm876 = vcmp.ge.f32.partialorder %v833, 0.0
  %vm877 = vcmp.ge.f32.partialorder %v834, 0.0
  %vm878 = vcmp.ge.f32.partialorder %v835, 0.0
  %vm879 = vcmp.ge.f32.partialorder %v836, 0.0
  %vm880 = vcmp.ge.f32.partialorder %v837, 0.0
  %vm881 = vcmp.ge.f32.partialorder %v838, 0.0
  %vm882 = vcmp.ge.f32.partialorder %v839, 0.0
  %vm883 = vcmp.ge.f32.partialorder %v840, 0.0
  %vm884 = vcmp.ge.f32.partialorder %v841, 0.0
  %vm885 = vcmp.ge.f32.partialorder %v842, 0.0
  %vm886 = vcmp.ge.f32.partialorder %v843, 0.0
  %vm887 = vcmp.ge.f32.partialorder %v844, 0.0
  %vm888 = vcmp.ge.f32.partialorder %v845, 0.0
  %vm889 = vcmp.ge.f32.partialorder %v846, 0.0
  %vm890 = vcmp.ge.f32.partialorder %v847, 0.0
  %vm891 = vcmp.ge.f32.partialorder %v848, 0.0
  %v892 = vmul.f32 %v806, 0.2
  %v893 = vmul.f32 %v807, 0.2
  %v894 = vmul.f32 %v808, 0.2
  %v895 = vmul.f32 %v809, 0.2
  %v896 = vmul.f32 %v810, 0.2
  %v897 = vmul.f32 %v811, 0.2
  %v898 = vmul.f32 %v812, 0.2
  %v899 = vmul.f32 %v813, 0.2
  %v900 = vmul.f32 %v814, 0.2
  %v901 = vmul.f32 %v815, 0.2
  %v902 = vmul.f32 %v816, 0.2
  %v903 = vmul.f32 %v817, 0.2
  %v904 = vmul.f32 %v818, 0.2
  %v905 = vmul.f32 %v819, 0.2
  %v906 = vmul.f32 %v820, 0.2
  %v907 = vmul.f32 %v821, 0.2
  %v908 = vmul.f32 %v822, 0.2
  %v909 = vmul.f32 %v823, 0.2
  %v910 = vmul.f32 %v824, 0.2
  %v911 = vmul.f32 %v825, 0.2
  %v912 = vmul.f32 %v826, 0.2
  %v913 = vmul.f32 %v827, 0.2
  %v914 = vmul.f32 %v828, 0.2
  %v915 = vmul.f32 %v829, 0.2
  %v916 = vmul.f32 %v830, 0.2
  %v917 = vmul.f32 %v831, 0.2
  %v918 = vmul.f32 %v832, 0.2
  %v919 = vmul.f32 %v833, 0.2
  %v920 = vmul.f32 %v834, 0.2
  %v921 = vmul.f32 %v835, 0.2
  %v922 = vmul.f32 %v836, 0.2
  %v923 = vmul.f32 %v837, 0.2
  %v924 = vmul.f32 %v838, 0.2
  %v925 = vmul.f32 %v839, 0.2
  %v926 = vmul.f32 %v840, 0.2
  %v927 = vmul.f32 %v841, 0.2
  %v928 = vmul.f32 %v842, 0.2
  %v929 = vmul.f32 %v843, 0.2
  %v930 = vmul.f32 %v844, 0.2
  %v931 = vmul.f32 %v845, 0.2
  %v932 = vmul.f32 %v846, 0.2
  %v933 = vmul.f32 %v847, 0.2
  %v934 = vmul.f32 %v848, 0.2
  %v935 = vsel %vm849, %v806, %v892
  %v936 = vsel %vm850, %v807, %v893
  %v937 = vsel %vm851, %v808, %v894
  %v938 = vsel %vm852, %v809, %v895
  %v939 = vsel %vm853, %v810, %v896
  %v940 = vsel %vm854, %v811, %v897
  %v941 = vsel %vm855, %v812, %v898
  %v942 = vsel %vm856, %v813, %v899
  %v943 = vsel %vm857, %v814, %v900
  %v944 = vsel %vm858, %v815, %v901
  %v945 = vsel %vm859, %v816, %v902
  %v946 = vsel %vm860, %v817, %v903
  %v947 = vsel %vm861, %v818, %v904
  %v948 = vsel %vm862, %v819, %v905
  %v949 = vsel %vm863, %v820, %v906
  %v950 = vsel %vm864, %v821, %v907
  %v951 = vsel %vm865, %v822, %v908
  %v952 = vsel %vm866, %v823, %v909
  %v953 = vsel %vm867, %v824, %v910
  %v954 = vsel %vm868, %v825, %v911
  %v955 = vsel %vm869, %v826, %v912
  %v956 = vsel %vm870, %v827, %v913
  %v957 = vsel %vm871, %v828, %v914
  %v958 = vsel %vm872, %v829, %v915
  %v959 = vsel %vm873, %v830, %v916
  %v960 = vsel %vm874, %v831, %v917
  %v961 = vsel %vm875, %v832, %v918
  %v962 = vsel %vm876, %v833, %v919
  %v963 = vsel %vm877, %v834, %v920
  %v964 = vsel %vm878, %v835, %v921
  %v965 = vsel %vm879, %v836, %v922
  %v966 = vsel %vm880, %v837, %v923
  %v967 = vsel %vm881, %v838, %v924
  %v968 = vsel %vm882, %v839, %v925
  %v969 = vsel %vm883, %v840, %v926
  %v970 = vsel %vm884, %v841, %v927
  %v971 = vsel %vm885, %v842, %v928
  %v972 = vsel %vm886, %v843, %v929
  %v973 = vsel %vm887, %v844, %v930
  %v974 = vsel %vm888, %v845, %v931
  %v975 = vsel %vm889, %v846, %v932
  %v976 = vsel %vm890, %v847, %v933
  %v977 = vsel %vm891, %v848, %v934
  %978 = vst.msk [vmem:[%s4] sm:$0xff] %vm62, %v935
  %979 = vst.msk [vmem:[%s4 + $0x8] sm:$0xff] %vm62, %v936
  %980 = vst.msk [vmem:[%s4 + $0x10] sm:$0xff] %vm62, %v937
  %981 = vst.msk [vmem:[%s4 + $0x18] sm:$0xff] %vm62, %v938
  %982 = vst.msk [vmem:[%s4 + $0x20] sm:$0xff] %vm62, %v939
  %983 = vst.msk [vmem:[%s4 + $0x28] sm:$0xff] %vm62, %v940
  %984 = vst.msk [vmem:[%s4 + $0x30] sm:$0xff] %vm62, %v941
  %985 = vst.msk [vmem:[%s4 + $0x38] sm:$0xff] %vm62, %v942
  %986 = vst.msk [vmem:[%s4 + $0x40] sm:$0xff] %vm62, %v943
  %987 = vst.msk [vmem:[%s4 + $0x48] sm:$0xff] %vm62, %v944
  %988 = vst.msk [vmem:[%s4 + $0x50] sm:$0xff] %vm62, %v945
  %989 = vst.msk [vmem:[%s4 + $0x58] sm:$0xff] %vm62, %v946
  %990 = vst.msk [vmem:[%s4 + $0x60] sm:$0xff] %vm62, %v947
  %991 = vst.msk [vmem:[%s4 + $0x68] sm:$0xff] %vm62, %v948
  %992 = vst.msk [vmem:[%s4 + $0x70] sm:$0xff] %vm62, %v949
  %993 = vst.msk [vmem:[%s4 + $0x78] sm:$0xff] %vm62, %v950
  %994 = vst.msk [vmem:[%s4 + $0x80] sm:$0xff] %vm62, %v951
  %995 = vst.msk [vmem:[%s4 + $0x88] sm:$0xff] %vm62, %v952
  %996 = vst.msk [vmem:[%s4 + $0x90] sm:$0xff] %vm62, %v953
  %997 = vst.msk [vmem:[%s4 + $0x98] sm:$0xff] %vm62, %v954
  %998 = vst.msk [vmem:[%s4 + $0xa0] sm:$0xff] %vm62, %v955
  %999 = vst.msk [vmem:[%s4 + $0xa8] sm:$0xff] %vm62, %v956
  %1000 = vst.msk [vmem:[%s4 + $0xb0] sm:$0xff] %vm62, %v957
  %1001 = vst.msk [vmem:[%s4 + $0xb8] sm:$0xff] %vm62, %v958
  %1002 = vst.msk [vmem:[%s4 + $0xc0] sm:$0xff] %vm62, %v959
  %1003 = vst.msk [vmem:[%s4 + $0xc8] sm:$0xff] %vm62, %v960
  %1004 = vst.msk [vmem:[%s4 + $0xd0] sm:$0xff] %vm62, %v961
  %1005 = vst.msk [vmem:[%s4 + $0xd8] sm:$0xff] %vm62, %v962
  %1006 = vst.msk [vmem:[%s4 + $0xe0] sm:$0xff] %vm62, %v963
  %1007 = vst.msk [vmem:[%s4 + $0xe8] sm:$0xff] %vm62, %v964
  %1008 = vst.msk [vmem:[%s4 + $0xf0] sm:$0xff] %vm62, %v965
  %1009 = vst.msk [vmem:[%s4 + $0xf8] sm:$0xff] %vm62, %v966
  %1010 = vst.msk [vmem:[%s4 + $0x100] sm:$0xff] %vm62, %v967
  %1011 = vst.msk [vmem:[%s4 + $0x108] sm:$0xff] %vm62, %v968
  %1012 = vst.msk [vmem:[%s4 + $0x110] sm:$0xff] %vm62, %v969
  %1013 = vst.msk [vmem:[%s4 + $0x118] sm:$0xff] %vm62, %v970
  %1014 = vst.msk [vmem:[%s4 + $0x120] sm:$0xff] %vm62, %v971
  %1015 = vst.msk [vmem:[%s4 + $0x128] sm:$0xff] %vm62, %v972
  %1016 = vst.msk [vmem:[%s4 + $0x130] sm:$0xff] %vm62, %v973
  %1017 = vst.msk [vmem:[%s4 + $0x138] sm:$0xff] %vm62, %v974
  %1018 = vst.msk [vmem:[%s4 + $0x140] sm:$0xff] %vm62, %v975
  %1019 = vst.msk [vmem:[%s4 + $0x148] sm:$0xff] %vm62, %v976
  %1020 = vst.msk [vmem:[%s4 + $0x150] sm:$0x3] %vm555, %v977
  // Predicated region
  $region18: #{discriminator_forward.2} parent=0 // pred_check
    _
  $region19: #{discriminator_forward.2} parent=0 // pred_check_branch
    %1022 = sbr.rel (0) target = $region21
  $region20: #{discriminator_forward.2} parent=0 // pred_region
    _
  $region21: #{discriminator_forward.2} parent=0 // pred_fallthru
    _
  // Predicated region
  $region22: #{discriminator_forward.2} parent=0 // pred_check
    _
  $region23: #{discriminator_forward.2} parent=0 // pred_check_branch
    %1024 = sbr.rel (0) target = $region25
  $region24: #{discriminator_forward.2} parent=0 // pred_region
    _
  $region25: #{discriminator_forward.2} parent=0 // pred_fallthru
    _

// kernel: discriminator_forward.3
$region0: #{discriminator_forward.3}
  #allocation0 [shape = 'u32[]', space=smem, size = 0x4, offset = 0x4, fixed_abs, tag = 'smem constant byte address 0x4 - core index']
  #allocation1 [shape = 'u32[144,128]{1,0:T(1,128)}', space=vmem, size = 0x12000, scoped, tag = 'internal scratch']
  #allocation2 [shape = 'f32[1,1]{1,0:T(1,128)S(1)}', space=vmem, size = 0x200, scoped, tag = 'scoped memory for discriminator_forward.3']
  %s0 = inlined_call_operand.vmem [shape: f32[50,256], index: 0, kind: input, shape index: {}]
  %s1 = inlined_call_operand.vmem [shape: f32[256,32], index: 1, kind: input, shape index: {}]
  %s2 = inlined_call_operand.vmem [shape: f32[1,32], index: 2, kind: input, shape index: {}]
  %s3 = inlined_call_operand.vmem [shape: f32[1,32], index: 3, kind: input, shape index: {}]
  %s4 = inlined_call_operand.vmem [shape: f32[25,32], index: 4, kind: input, shape index: {}]
  %s5 = inlined_call_operand.<no memory space> [shape: f32[1,1], index: 5, kind: input, shape index: {}]
  %s6 = inlined_call_operand.vmem [shape: f32[2,1], index: 6, kind: output, shape index: {}]
  %s7 = sld [smem:[#allocation0]]
  $region34: #{discriminator_forward.3} parent=0
    _
  %s9 = ssub.s32 1, %s7
  %s10 = scalar_select 0, %s9, %s7
  %v11 = vstv %s5
  %12 = vst [vmem:[#allocation2] sm:$0x1] %v11
  // Predicated region
  $region2: #{discriminator_forward.3} parent=0 // pred_check
    _
  $region3: #{discriminator_forward.3} parent=0 // pred_check_branch
    %14 = sbr.rel (0) target = $region5
  $region4: #{discriminator_forward.3} parent=0 // pred_region
    _
  $region5: #{discriminator_forward.3} parent=0 // pred_fallthru
    _
  // Predicated region
  $region6: #{discriminator_forward.3} parent=0 // pred_check
    _
  $region7: #{discriminator_forward.3} parent=0 // pred_check_branch
    %16 = sbr.rel (0) target = $region9
  $region8: #{discriminator_forward.3} parent=0 // pred_region
    _
  $region9: #{discriminator_forward.3} parent=0 // pred_fallthru
    _
  // Predicated region
  $region10: #{discriminator_forward.3} parent=0 // pred_check
    _
  $region11: #{discriminator_forward.3} parent=0 // pred_check_branch
    %18 = sbr.rel (0) target = $region13
  $region12: #{discriminator_forward.3} parent=0 // pred_region
    _
  $region13: #{discriminator_forward.3} parent=0 // pred_fallthru
    _
  // Predicated region
  $region14: #{discriminator_forward.3} parent=0 // pred_check
    _
  $region15: #{discriminator_forward.3} parent=0 // pred_check_branch
    %20 = sbr.rel (0) target = $region17
  $region16: #{discriminator_forward.3} parent=0 // pred_region
    _
  $region17: #{discriminator_forward.3} parent=0 // pred_fallthru
    _
  // Predicated region
  $region18: #{discriminator_forward.3} parent=0 // pred_check
    _
  $region19: #{discriminator_forward.3} parent=0 // pred_check_branch
    %22 = sbr.rel (0) target = $region21
  $region20: #{discriminator_forward.3} parent=0 // pred_region
    _
  $region21: #{discriminator_forward.3} parent=0 // pred_fallthru
    _
  // Predicated region
  $region22: #{discriminator_forward.3} parent=0 // pred_check
    _
  $region23: #{discriminator_forward.3} parent=0 // pred_check_branch
    %24 = sbr.rel (0) target = $region25
  $region24: #{discriminator_forward.3} parent=0 // pred_region
    _
  $region25: #{discriminator_forward.3} parent=0 // pred_fallthru
    _
  %v25 = vld [vmem:[%s0] sm:$0xff]
  %v26 = vld [vmem:[%s0 + $0x8] sm:$0xff]
  %v27 = vld [vmem:[%s0 + $0x10] sm:$0xff]
  %v28 = vld [vmem:[%s0 + $0x18] sm:$0xff]
  %v29 = vld [vmem:[%s0 + $0x20] sm:$0xff]
  %v30 = vld [vmem:[%s0 + $0x28] sm:$0xff]
  %v31 = vld [vmem:[%s0 + $0x30] sm:$0xff]
  %v32 = vld [vmem:[%s0 + $0x38] sm:$0xff]
  %v33 = vld [vmem:[%s0 + $0x40] sm:$0xff]
  %v34 = vld [vmem:[%s0 + $0x48] sm:$0xff]
  %v35 = vld [vmem:[%s0 + $0x50] sm:$0xff]
  %v36 = vld [vmem:[%s0 + $0x58] sm:$0xff]
  %v37 = vld [vmem:[%s0 + $0x60] sm:$0x3]
  %v38 = vld [vmem:[%s0 + $0x68] sm:$0x3]
  %v39 = vld [vmem:[%s1] sm:$0xff]
  %v40 = vld [vmem:[%s1 + $0x8] sm:$0xff]
  %v41 = vld [vmem:[%s1 + $0x10] sm:$0xff]
  %v42 = vld [vmem:[%s1 + $0x18] sm:$0xff]
  %v43 = vld [vmem:[%s1 + $0x20] sm:$0xff]
  %v44 = vld [vmem:[%s1 + $0x28] sm:$0xff]
  %v45 = vld [vmem:[%s1 + $0x30] sm:$0xff]
  %v46 = vld [vmem:[%s1 + $0x38] sm:$0xff]
  %v47 = vld [vmem:[%s1 + $0x40] sm:$0xff]
  %v48 = vld [vmem:[%s1 + $0x48] sm:$0xff]
  %v49 = vld [vmem:[%s1 + $0x50] sm:$0xff]
  %v50 = vld [vmem:[%s1 + $0x58] sm:$0xff]
  %v51 = vld [vmem:[%s1 + $0x60] sm:$0xff]
  %v52 = vld [vmem:[%s1 + $0x68] sm:$0xff]
  %v53 = vld [vmem:[%s1 + $0x70] sm:$0xff]
  %v54 = vld [vmem:[%s1 + $0x78] sm:$0xff]
  %v55 = vld [vmem:[%s1 + $0x80] sm:$0xff]
  %v56 = vld [vmem:[%s1 + $0x88] sm:$0xff]
  %v57 = vld [vmem:[%s1 + $0x90] sm:$0xff]
  %v58 = vld [vmem:[%s1 + $0x98] sm:$0xff]
  %v59 = vld [vmem:[%s1 + $0xa0] sm:$0xff]
  %v60 = vld [vmem:[%s1 + $0xa8] sm:$0xff]
  %v61 = vld [vmem:[%s1 + $0xb0] sm:$0xff]
  %v62 = vld [vmem:[%s1 + $0xb8] sm:$0xff]
  %v63 = vld [vmem:[%s1 + $0xc0] sm:$0xff]
  %v64 = vld [vmem:[%s1 + $0xc8] sm:$0xff]
  %v65 = vld [vmem:[%s1 + $0xd0] sm:$0xff]
  %v66 = vld [vmem:[%s1 + $0xd8] sm:$0xff]
  %v67 = vld [vmem:[%s1 + $0xe0] sm:$0xff]
  %v68 = vld [vmem:[%s1 + $0xe8] sm:$0xff]
  %v69 = vld [vmem:[%s1 + $0xf0] sm:$0xff]
  %v70 = vld [vmem:[%s1 + $0xf8] sm:$0xff]
  %71 = vmatprep.subr.mxu0 0.0
  %72 = vmatpush1.msra.mxu0 %v39
  %73 = vmatprep.subr.mxu0 0.0
  %74 = vmatpush1.msra.mxu0 %v40
  %75 = vmatprep.subr.mxu0 0.0
  %76 = vmatpush1.msra.mxu0 %v41
  %77 = vmatprep.subr.mxu0 0.0
  %78 = vmatpush1.msra.mxu0 %v42
  %79 = vmatprep.subr.mxu0 0.0
  %80 = vmatpush1.msra.mxu0 %v43
  %81 = vmatprep.subr.mxu0 0.0
  %82 = vmatpush1.msra.mxu0 %v44
  %83 = vmatprep.subr.mxu0 0.0
  %84 = vmatpush1.msra.mxu0 %v45
  %85 = vmatprep.subr.mxu0 0.0
  %86 = vmatpush1.msra.mxu0 %v46
  %87 = vmatprep.subr.mxu0 0.0
  %88 = vmatpush1.msra.mxu0 %v47
  %89 = vmatprep.subr.mxu0 0.0
  %90 = vmatpush1.msra.mxu0 %v48
  %91 = vmatprep.subr.mxu0 0.0
  %92 = vmatpush1.msra.mxu0 %v49
  %93 = vmatprep.subr.mxu0 0.0
  %94 = vmatpush1.msra.mxu0 %v50
  %95 = vmatprep.subr.mxu0 0.0
  %96 = vmatpush1.msra.mxu0 %v51
  %97 = vmatprep.subr.mxu0 0.0
  %98 = vmatpush1.msra.mxu0 %v52
  %99 = vmatprep.subr.mxu0 0.0
  %100 = vmatpush1.msra.mxu0 %v53
  %101 = vmatprep.subr.mxu0 0.0
  %102 = vmatpush1.msra.mxu0 %v54
  %103 = vmatprep.subr.mxu0 0.0
  %104 = vmatpush1.msra.mxu0 %v55
  %105 = vmatprep.subr.mxu0 0.0
  %106 = vmatpush1.msra.mxu0 %v56
  %107 = vmatprep.subr.mxu0 0.0
  %108 = vmatpush1.msra.mxu0 %v57
  %109 = vmatprep.subr.mxu0 0.0
  %110 = vmatpush1.msra.mxu0 %v58
  %111 = vmatprep.subr.mxu0 0.0
  %112 = vmatpush1.msra.mxu0 %v59
  %113 = vmatprep.subr.mxu0 0.0
  %114 = vmatpush1.msra.mxu0 %v60
  %115 = vmatprep.subr.mxu0 0.0
  %116 = vmatpush1.msra.mxu0 %v61
  %117 = vmatprep.subr.mxu0 0.0
  %118 = vmatpush1.msra.mxu0 %v62
  %119 = vmatprep.subr.mxu0 0.0
  %120 = vmatpush1.msra.mxu0 %v63
  %121 = vmatprep.subr.mxu0 0.0
  %122 = vmatpush1.msra.mxu0 %v64
  %123 = vmatprep.subr.mxu0 0.0
  %124 = vmatpush1.msra.mxu0 %v65
  %125 = vmatprep.subr.mxu0 0.0
  %126 = vmatpush1.msra.mxu0 %v66
  %127 = vmatprep.subr.mxu0 0.0
  %128 = vmatpush1.msra.mxu0 %v67
  %129 = vmatprep.subr.mxu0 0.0
  %130 = vmatpush1.msra.mxu0 %v68
  %131 = vmatprep.subr.mxu0 0.0
  %132 = vmatpush1.msra.mxu0 %v69
  %133 = vmatprep.subr.mxu0 0.0
  %134 = vmatpush1.msra.mxu0 %v70
  %135 = vmatprep.mubr.f32.mxu0 %v26
  %136 = vmatmul.mubr.f32.gmra.mrb[0].mxu0 %v25
  %v137 = vpop.f32.mrb[0].mxu0
  %v138 = vadd.f32 0.0, %v137
  %v139 = vpop.f32.mrb[0].mxu0
  %140 = vmatprep.mubr.f32.mxu0 %v28
  %141 = vmatmul.mubr.f32.gmra.mrb[0].mxu0 %v27
  %v142 = vpop.f32.mrb[0].mxu0
  %v143 = vadd.f32 0.0, %v142
  %v144 = vpop.f32.mrb[0].mxu0
  %145 = vmatprep.mubr.f32.mxu0 %v30
  %146 = vmatmul.mubr.f32.gmra.mrb[0].mxu0 %v29
  %v147 = vpop.f32.mrb[0].mxu0
  %v148 = vadd.f32 0.0, %v147
  %v149 = vpop.f32.mrb[0].mxu0
  %150 = vmatprep.mubr.f32.mxu0 %v32
  %151 = vmatmul.mubr.f32.gmra.mrb[0].mxu0 %v31
  %v152 = vpop.f32.mrb[0].mxu0
  %v153 = vadd.f32 0.0, %v152
  %v154 = vpop.f32.mrb[0].mxu0
  %155 = vmatprep.mubr.f32.mxu0 %v34
  %156 = vmatmul.mubr.f32.gmra.mrb[0].mxu0 %v33
  %v157 = vpop.f32.mrb[0].mxu0
  %v158 = vadd.f32 0.0, %v157
  %v159 = vpop.f32.mrb[0].mxu0
  %160 = vmatprep.mubr.f32.mxu0 %v36
  %161 = vmatmul.mubr.f32.gmra.mrb[0].mxu0 %v35
  %v162 = vpop.f32.mrb[0].mxu0
  %v163 = vadd.f32 0.0, %v162
  %v164 = vpop.f32.mrb[0].mxu0
  %165 = vmatprep.mubr.f32.mxu0 %v38
  %166 = vmatmul.mubr.f32.gmra.mrb[0].mxu0 %v37
  %v167 = vpop.f32.mrb[0].mxu0
  %v168 = vadd.f32 0.0, %v167
  %v169 = vpop.f32.mrb[0].mxu0
  %170 = vdwg.mxu0
  %vm171 = vcmask 261120
  %v172 = vsel %vm171, %v138, 0.0
  %v173 = vsel %vm171, %v143, 0.0
  %v174 = vadd.f32 %v172, %v173
  %v175 = vsel %vm171, %v148, 0.0
  %v176 = vadd.f32 %v174, %v175
  %v177 = vsel %vm171, %v153, 0.0
  %v178 = vadd.f32 %v176, %v177
  %v179 = vsel %vm171, %v158, 0.0
  %v180 = vadd.f32 %v178, %v179
  %v181 = vsel %vm171, %v163, 0.0
  %v182 = vadd.f32 %v180, %v181
  %vm183 = vcmask 254976
  %v184 = vsel %vm183, %v168, 0.0
  %v185 = vadd.f32 %v182, %v184
  %v186 = vrot.slane %v185, 4
  %v187 = vadd.f32 %v185, %v186
  %v188 = vrot.slane %v187, 2
  %v189 = vadd.f32 %v187, %v188
  %v190 = vrot.slane %v189, 1
  %v191 = vadd.f32 %v189, %v190
  %v192 = vrcp.pop 50.0
  %v193 = vmul.f32 %v191, %v192
  %v194 = vsub.f32 %v138, %v193
  %v195 = vsub.f32 %v143, %v193
  %v196 = vsub.f32 %v148, %v193
  %v197 = vsub.f32 %v153, %v193
  %v198 = vsub.f32 %v158, %v193
  %v199 = vsub.f32 %v163, %v193
  %v200 = vsub.f32 %v168, %v193
  %v201 = vmul.f32 %v194, %v194
  %v202 = vmul.f32 %v195, %v195
  %v203 = vmul.f32 %v196, %v196
  %v204 = vmul.f32 %v197, %v197
  %v205 = vmul.f32 %v198, %v198
  %v206 = vmul.f32 %v199, %v199
  %v207 = vmul.f32 %v200, %v200
  %v208 = vsel %vm171, %v201, 0.0
  %v209 = vsel %vm171, %v202, 0.0
  %v210 = vadd.f32 %v208, %v209
  %v211 = vsel %vm171, %v203, 0.0
  %v212 = vadd.f32 %v210, %v211
  %v213 = vsel %vm171, %v204, 0.0
  %v214 = vadd.f32 %v212, %v213
  %v215 = vsel %vm171, %v205, 0.0
  %v216 = vadd.f32 %v214, %v215
  %v217 = vsel %vm171, %v206, 0.0
  %v218 = vadd.f32 %v216, %v217
  %v219 = vsel %vm183, %v207, 0.0
  %v220 = vadd.f32 %v218, %v219
  %v221 = vrot.slane %v220, 4
  %v222 = vadd.f32 %v220, %v221
  %v223 = vrot.slane %v222, 2
  %v224 = vadd.f32 %v222, %v223
  %v225 = vrot.slane %v224, 1
  %v226 = vadd.f32 %v224, %v225
  %v227 = vmul.f32 %v226, %v192
  %v228 = vld [vmem:[%s2] sm:$0x1]
  %v229 = vadd.f32 %v227, 1e-05
  %v230 = vrsqrt.pop %v229
  %v231 = vmul.f32 %v228, %v230
  %v232 = vld [vmem:[%s3] sm:$0x1]
  %v233 = vmul.f32 %v193, %v231
  %v234 = vsub.f32 %v232, %v233
  %v236 = vlaneseq
  %v237 = vshrl.u32 %v236, 7
  %v238 = vsub.s32 0, %v237
  %v239 = vrot.slane %v231, %v238
  %v241 = vmul.f32 %v138, %v239
  %v242 = vmul.f32 %v143, %v239
  %v243 = vmul.f32 %v148, %v239
  %v244 = vmul.f32 %v153, %v239
  %v245 = vmul.f32 %v158, %v239
  %v246 = vmul.f32 %v163, %v239
  %v247 = vmul.f32 %v168, %v239
  %v249 = vlaneseq
  %v250 = vshrl.u32 %v249, 7
  %v251 = vsub.s32 0, %v250
  %v252 = vrot.slane %v234, %v251
  %v254 = vadd.f32 %v241, %v252
  %v255 = vadd.f32 %v242, %v252
  %v256 = vadd.f32 %v243, %v252
  %v257 = vadd.f32 %v244, %v252
  %v258 = vadd.f32 %v245, %v252
  %v259 = vadd.f32 %v246, %v252
  %v260 = vadd.f32 %v247, %v252
  %vm261 = vcmp.ge.f32.partialorder %v254, 0.0
  %vm262 = vcmp.ge.f32.partialorder %v255, 0.0
  %vm263 = vcmp.ge.f32.partialorder %v256, 0.0
  %vm264 = vcmp.ge.f32.partialorder %v257, 0.0
  %vm265 = vcmp.ge.f32.partialorder %v258, 0.0
  %vm266 = vcmp.ge.f32.partialorder %v259, 0.0
  %vm267 = vcmp.ge.f32.partialorder %v260, 0.0
  %v268 = vmul.f32 %v254, 0.2
  %v269 = vmul.f32 %v255, 0.2
  %v270 = vmul.f32 %v256, 0.2
  %v271 = vmul.f32 %v257, 0.2
  %v272 = vmul.f32 %v258, 0.2
  %v273 = vmul.f32 %v259, 0.2
  %v274 = vmul.f32 %v260, 0.2
  %v275 = vsel %vm261, %v254, %v268
  %v276 = vsel %vm262, %v255, %v269
  %v277 = vsel %vm263, %v256, %v270
  %v278 = vsel %vm264, %v257, %v271
  %v279 = vsel %vm265, %v258, %v272
  %v280 = vsel %vm266, %v259, %v273
  %v281 = vsel %vm267, %v260, %v274
  %v282 = vld [vmem:[%s4] sm:$0xff]
  %v283 = vld [vmem:[%s4 + $0x8] sm:$0xff]
  %v284 = vld [vmem:[%s4 + $0x10] sm:$0xff]
  %v285 = vld [vmem:[%s4 + $0x18] sm:$0x1]
  %v286 = vmul.f32 %v275, %v282
  %v287 = vmul.f32 %v276, %v283
  %v288 = vmul.f32 %v277, %v284
  %v289 = vmul.f32 %v278, %v285
  %v290 = vsel %vm171, %v286, 0.0
  %v291 = vsel %vm171, %v287, 0.0
  %v292 = vadd.f32 %v290, %v291
  %v293 = vsel %vm171, %v288, 0.0
  %v294 = vadd.f32 %v292, %v293
  %vm295 = vcmask 253952
  %v296 = vsel %vm295, %v289, 0.0
  %v297 = vadd.f32 %v294, %v296
  %298 = vadd.xlane.f32.xlu0 %v297
  %v299 = vpop.xlane.xlu0 %298
  %v300 = vrot.slane %v299, 4
  %v301 = vadd.f32 %v299, %v300
  %v302 = vrot.slane %v301, 2
  %v303 = vadd.f32 %v301, %v302
  %v304 = vrot.slane %v303, 1
  %v305 = vadd.f32 %v303, %v304
  %s306 = vtos %v305
  %v307 = vstv %s306
  %vm312 = vcmask 1040384
  %v313 = vrot.slane %v282, 7
  %v314 = vrot.slane %v283, 7
  %v315 = vsel %vm312, %v313, %v314
  %v316 = vrot.slane %v284, 7
  %v317 = vsel %vm312, %v314, %v316
  %v318 = vrot.slane %v285, 7
  %v319 = vsel %vm312, %v316, %v318
  %v324 = vmul.f32 %v278, %v313
  %v325 = vmul.f32 %v279, %v315
  %v326 = vmul.f32 %v280, %v317
  %v327 = vmul.f32 %v281, %v319
  %vm332 = vcmask 1046528
  %v333 = vrot.slane %v324, 1
  %v334 = vrot.slane %v325, 1
  %v335 = vsel %vm332, %v333, %v334
  %v336 = vrot.slane %v326, 1
  %v337 = vsel %vm332, %v334, %v336
  %v338 = vrot.slane %v327, 1
  %v339 = vsel %vm332, %v336, %v338
  %v344 = vsel %vm171, %v335, 0.0
  %v345 = vsel %vm171, %v337, 0.0
  %v346 = vadd.f32 %v344, %v345
  %v347 = vsel %vm171, %v339, 0.0
  %v348 = vadd.f32 %v346, %v347
  %v349 = vsel %vm295, %v338, 0.0
  %v350 = vadd.f32 %v348, %v349
  %351 = vadd.xlane.f32.xlu0 %v350
  %v352 = vpop.xlane.xlu0 %351
  %v353 = vrot.slane %v352, 4
  %v354 = vadd.f32 %v352, %v353
  %v355 = vrot.slane %v354, 2
  %v356 = vadd.f32 %v354, %v355
  %v357 = vrot.slane %v356, 1
  %v358 = vadd.f32 %v356, %v357
  %s359 = vtos %v358
  %v360 = vstv %s359
  %v361 = vsel %vm312, %v307, %v360
  %v362 = vld [vmem:[#allocation2] sm:$0x1]
  %v364 = vlaneseq
  %v365 = vshrl.u32 %v364, 7
  %v366 = vsub.s32 0, %v365
  %v367 = vrot.slane %v362, %v366
  %v369 = vadd.f32 %v361, %v367
  %vm370 = vcmask 1024
  %371 = vst.msk [vmem:[%s6] sm:$0x3] %vm370, %v369
  // Predicated region
  $region26: #{discriminator_forward.3} parent=0 // pred_check
    _
  $region27: #{discriminator_forward.3} parent=0 // pred_check_branch
    %373 = sbr.rel (0) target = $region29
  $region28: #{discriminator_forward.3} parent=0 // pred_region
    _
  $region29: #{discriminator_forward.3} parent=0 // pred_fallthru
    _
  // Predicated region
  $region30: #{discriminator_forward.3} parent=0 // pred_check
    _
  $region31: #{discriminator_forward.3} parent=0 // pred_check_branch
    %375 = sbr.rel (0) target = $region33
  $region32: #{discriminator_forward.3} parent=0 // pred_region
    _
  $region33: #{discriminator_forward.3} parent=0 // pred_fallthru
    _

</llo_original>
